<compile_context>
chip_gen: v7x
topology: tpu7x:2x2x1
jax: 0.10.0
libtpu: 0.0.40
codegen_flags: <defaults>
</compile_context>

<pallas_src>
import functools

import numpy as np
import jax
import jax.numpy as jnp
from jax.experimental import pallas as pl
from jax.experimental.pallas import tpu as pltpu


# ------------------------------ sizing helpers -------------------------------

def _round_up(x, m):
    return ((x + m - 1) // m) * m


def _vmem_capacity_bytes():
    try:
        return int(pltpu.get_tpu_info().vmem_capacity_bytes)
    except Exception:
        return 128 * 1024 * 1024


def _pick_vmem_limit():
    # Raise the scoped-VMEM budget above the 16 MiB v5e default, but stay well
    # under the physical capacity (v7x only has 64 MiB per TensorCore).
    return int(min(64 * 1024 * 1024, _vmem_capacity_bytes() // 2))


def _pick_row_tile(batch):
    """Row tile over the (padded) batch; smaller on v7x (64 MiB VMEM)."""
    bp = _round_up(max(batch, 1), 8)
    tm_cap = 256 if _vmem_capacity_bytes() >= 96 * 1024 * 1024 else 128
    tm = min(tm_cap, bp)
    bp = _round_up(bp, tm)
    return tm, bp


# ------------------------------- fused kernel --------------------------------

def _fused_kernel(x_ref, pj1_ref, pjb1_ref, pj2_ref, pjb2_ref, gam_ref, bet_ref,
                  aln_ref, gw1_ref, b1_ref, w2_ref, b2_ref, w3m_ref, b3_ref,
                  msk_ref, pw1_ref, pb1_ref, pw2_ref, pb2_ref,
                  feat_ref, score_ref):
    """Projector (Linear-ReLU-Linear-LayerNorm, per node) + full causal
    matching module for one row tile of both modalities, all in-register."""
    f32 = jnp.float32
    bf16 = jnp.bfloat16
    a_ln = aln_ref[...]                                    # (N*O, N*O) f32

    def project(m):
        # rows = batch, lanes = node*feature; per-node weights are block-diag.
        x = x_ref[m]                                       # (TM, N*F) bf16
        h = jnp.dot(x, pj1_ref[m], preferred_element_type=f32) + pjb1_ref[m]
        h = jnp.maximum(h, 0.0)
        y = jnp.dot(h.astype(bf16), pj2_ref[m],
                    preferred_element_type=f32) + pjb2_ref[m]
        # per-node LayerNorm via block-averaging matmul (stats stay f32).
        mean = jnp.dot(y, a_ln, preferred_element_type=f32)
        d = y - mean
        var = jnp.dot(d * d, a_ln, preferred_element_type=f32)
        yn = d * jax.lax.rsqrt(var + 1e-5)
        return yn * gam_ref[m] + bet_ref[m]                # (TM, N*O) f32

    def match(feat):
        # causal_strength_net on every unique edge + per-path aggregation, as
        # lane-dense matmuls against pre-folded block-diagonal weights.
        fb = feat.astype(bf16)
        h1 = jnp.maximum(
            jnp.dot(fb, gw1_ref[...], preferred_element_type=f32)
            + b1_ref[...], 0.0)                            # (TM, E*O)
        h2 = jnp.maximum(
            jnp.dot(h1.astype(bf16), w2_ref[...], preferred_element_type=f32)
            + b2_ref[...], 0.0)                            # (TM, E*O//2)
        # W3 folded with the path scatter; 0/1 mask keeps padded slots at 0.
        pin = msk_ref[...] * jax.nn.sigmoid(
            jnp.dot(h2.astype(bf16), w3m_ref[...], preferred_element_type=f32)
            + b3_ref[...])                                 # (TM, P*O)
        ph = jnp.maximum(
            jnp.dot(pin.astype(bf16), pw1_ref[...], preferred_element_type=f32)
            + pb1_ref[...], 0.0)                           # (TM, P*O)
        return jax.nn.sigmoid(
            jnp.dot(ph.astype(bf16), pw2_ref[...], preferred_element_type=f32)
            + pb2_ref[...])                                # (TM, P)

    feat_img = project(0)
    feat_txt = project(1)
    feat_ref[0] = feat_img.astype(feat_ref.dtype)
    feat_ref[1] = feat_txt.astype(feat_ref.dtype)

    combined = jnp.sqrt(match(feat_img) * match(feat_txt))      # (TM, P)
    best = jnp.max(combined, axis=-1, keepdims=True)            # (TM, 1)
    # lane-dense output: broadcast the per-row max to 128 lanes.
    score_ref[...] = jnp.broadcast_to(best, score_ref.shape).astype(score_ref.dtype)


# ------------------------------ kernel wrapper --------------------------------

def fused_retrieval(x_stacked, packed, tm):
    """x_stacked: (2, Bp, N*F) bf16, rows [image | text].
    Returns feat (2, Bp, N*O) f32 and scores (Bp, 128) f32 (max broadcast)."""
    N, F, H, O, P, E = (packed[k] for k in ("N", "F", "H", "O", "P", "E"))
    O2 = O // 2
    _, bp, _ = x_stacked.shape
    m = packed["match"]
    grid = (bp // tm,)

    def const(*shape):
        return pl.BlockSpec(shape, lambda i, _s=len(shape): (0,) * _s)

    in_specs = [
        pl.BlockSpec((2, tm, N * F), lambda i: (0, i, 0)),   # x (tiled rows)
        const(2, N * F, N * H),                              # PJ1  (bf16)
        const(2, 1, N * H),                                  # PJB1
        const(2, N * H, N * O),                              # PJ2  (bf16)
        const(2, 1, N * O),                                  # PJB2
        const(2, 1, N * O),                                  # GAMMA
        const(2, 1, N * O),                                  # BETA
        const(N * O, N * O),                                 # A_LN
        const(N * O, E * O),                                 # GW1  (bf16)
        const(1, E * O),                                     # B1
        const(E * O, E * O2),                                # W2   (bf16)
        const(1, E * O2),                                    # B2
        const(E * O2, P * O),                                # W3M  (bf16)
        const(1, P * O),                                     # B3
        const(1, P * O),                                     # MASK
        const(P * O, P * O),                                 # PW1  (bf16)
        const(1, P * O),                                     # PB1
        const(P * O, P),                                     # PW2  (bf16)
        const(1, P),                                         # PB2
    ]
    out_specs = (
        pl.BlockSpec((2, tm, N * O), lambda i: (0, i, 0)),
        pl.BlockSpec((tm, 128), lambda i: (i, 0)),
    )
    out_shape = (
        jax.ShapeDtypeStruct((2, bp, N * O), jnp.float32),
        jax.ShapeDtypeStruct((bp, 128), jnp.float32),
    )
    return pl.pallas_call(
        _fused_kernel,
        grid=grid,
        in_specs=in_specs,
        out_specs=out_specs,
        out_shape=out_shape,
        compiler_params=pltpu.CompilerParams(
            dimension_semantics=("parallel",),
            vmem_limit_bytes=_pick_vmem_limit()),
    )(x_stacked,
      packed["PJ1"], packed["PJB1"], packed["PJ2"], packed["PJB2"],
      packed["GAMMA"], packed["BETA"], packed["A_LN"],
      m["GW1"], m["B1"], m["W2"], m["B2"], m["W3M"], m["B3"], m["MASK"],
      m["PW1"], m["PB1"], m["PW2"], m["PB2"])


# ------------------------------- model pieces ---------------------------------

def _linear_init(key, fan_in, fan_out):
    kw, kb = jax.random.split(key)
    w = jax.random.normal(kw, (fan_in, fan_out), jnp.float32) * 0.05
    b = jax.random.normal(kb, (1, fan_out), jnp.float32) * 0.05
    return w, b


def init_params(key, feature_dim, hidden_dim, output_dim):
    ks = jax.random.split(key, 9)
    d = output_dim  # matching-module dim (see fidelity note above)
    params = {"proj": {}}
    for name, k0, k1 in (("img", ks[0], ks[1]), ("txt", ks[2], ks[3])):
        w1, b1 = _linear_init(k0, feature_dim, hidden_dim)
        w2, b2 = _linear_init(k1, hidden_dim, output_dim)
        gamma = jnp.ones((1, output_dim), jnp.float32)
        beta = jnp.zeros((1, output_dim), jnp.float32)
        params["proj"][name] = (w1, b1, w2, b2, gamma, beta)
    # causal_strength_net: Linear(2d,d) ReLU Linear(d,d//2) ReLU Linear(d//2,1) Sigmoid
    params["strength"] = (*_linear_init(ks[4], 2 * d, d),
                          *_linear_init(ks[5], d, d // 2),
                          *_linear_init(ks[6], d // 2, 1))
    # path_aggregation: Linear(d,d) ReLU Linear(d,1) Sigmoid
    params["pathagg"] = (*_linear_init(ks[7], d, d),
                         *_linear_init(ks[8], d, 1))
    return params


def all_simple_paths(edges, source, target, n_nodes):
    """Tiny static DFS replacement for nx.all_simple_paths."""
    adj = {i: [] for i in range(n_nodes)}
    for s, t in edges:
        adj[s].append(t)
    paths = []

    def dfs(node, path):
        if node == target:
            paths.append(list(path))
            return
        for nxt in adj[node]:
            if nxt not in path:
                path.append(nxt)
                dfs(nxt, path)
                path.pop()

    dfs(source, [source])
    return paths


def pack_params(params, paths, num_nodes, feature_dim, hidden_dim, output_dim):
    """Precompute the block-diagonal / pre-folded constant matrices that let
    the whole forward pass run as a single Pallas kernel."""
    N, F, H, O = num_nodes, feature_dim, hidden_dim, output_dim
    O2 = O // 2

    zero_scores = False
    if not paths:
        # TODO(synk): reference returns zero scores when there is no
        # source->target path; use one dummy path and zero the scores.
        paths = [[0, max(num_nodes - 1, 0)]]
        zero_scores = True
    P = len(paths)

    eyeN = np.eye(N, dtype=np.float32)

    def kronN(w):
        return np.kron(eyeN, np.asarray(w, np.float32))

    def tileN(b):
        return np.tile(np.asarray(b, np.float32), (1, N))

    stacks = {k: [] for k in ("pj1", "pjb1", "pj2", "pjb2", "gamma", "beta")}
    for name in ("img", "txt"):
        w1, b1, w2, b2, g, bt = params["proj"][name]
        stacks["pj1"].append(kronN(w1))
        stacks["pjb1"].append(tileN(b1))
        stacks["pj2"].append(kronN(w2))
        stacks["pjb2"].append(tileN(b2))
        stacks["gamma"].append(tileN(g))
        stacks["beta"].append(tileN(bt))

    packed = {
        "PJ1": jnp.asarray(np.stack(stacks["pj1"])).astype(jnp.bfloat16),
        "PJB1": jnp.asarray(np.stack(stacks["pjb1"])),
        "PJ2": jnp.asarray(np.stack(stacks["pj2"])).astype(jnp.bfloat16),
        "PJB2": jnp.asarray(np.stack(stacks["pjb2"])),
        "GAMMA": jnp.asarray(np.stack(stacks["gamma"])),
        "BETA": jnp.asarray(np.stack(stacks["beta"])),
        # per-node LayerNorm block-average matrix.
        "A_LN": jnp.asarray(np.kron(eyeN, np.full((O, O), 1.0 / O, np.float32))),
        "N": N, "F": F, "H": H, "O": O, "P": P,
        "zero_scores": zero_scores,
    }

    # unique edges in order of first appearance across all paths
    unique_edges = []
    for path in paths:
        for i in range(len(path) - 1):
            e = (path[i], path[i + 1])
            if e not in unique_edges:
                unique_edges.append(e)
    E = len(unique_edges)
    packed["E"] = E
    assert all(len(p) - 1 <= O for p in paths), \
        "per-path edge count must be <= matching dim (zero-pad scheme)"

    sw1, sb1, sw2, sb2, sw3, sb3 = [np.asarray(a, np.float32)
                                    for a in params["strength"]]
    pw1, pb1, pw2, pb2 = [np.asarray(a, np.float32) for a in params["pathagg"]]
    eyeE = np.eye(E, dtype=np.float32)
    eyeP = np.eye(P, dtype=np.float32)

    # G: (N*O, E*2O) gathers [feat[src], feat[dst]] per unique edge; it is
    # folded into the first strength layer (exact, both are linear).
    G = np.zeros((N * O, E * 2 * O), np.float32)
    for e, (s, d) in enumerate(unique_edges):
        for c in range(O):
            G[s * O + c, e * 2 * O + c] = 1.0
            G[d * O + c, e * 2 * O + O + c] = 1.0
    GW1 = G @ np.kron(eyeE, sw1)                             # (N*O, E*O)

    # M: (E, P*O) scatters edge strengths into zero-padded per-path slots;
    # W3 is folded into it; MASK keeps padded slots exactly 0.
    M = np.zeros((E, P * O), np.float32)
    for p, path in enumerate(paths):
        for j in range(len(path) - 1):
            e = unique_edges.index((path[j], path[j + 1]))
            M[e, p * O + j] = 1.0
    W3M = np.kron(eyeE, sw3) @ M                             # (E*O2, P*O)
    mask = M.sum(axis=0, keepdims=True)                      # (1, P*O) 0/1

    packed["match"] = {
        "GW1": jnp.asarray(GW1).astype(jnp.bfloat16),
        "B1": jnp.asarray(np.tile(sb1, (1, E))),
        "W2": jnp.asarray(np.kron(eyeE, sw2)).astype(jnp.bfloat16),
        "B2": jnp.asarray(np.tile(sb2, (1, E))),
        "W3M": jnp.asarray(W3M).astype(jnp.bfloat16),
        "B3": jnp.full((1, P * O), float(sb3[0, 0]), jnp.float32),
        "MASK": jnp.asarray(mask),
        "PW1": jnp.asarray(np.kron(eyeP, pw1)).astype(jnp.bfloat16),
        "PB1": jnp.asarray(np.tile(pb1, (1, P))),
        "PW2": jnp.asarray(np.kron(eyeP, pw2)).astype(jnp.bfloat16),
        "PB2": jnp.full((1, P), float(pb2[0, 0]), jnp.float32),
    }
    return packed


def retrieval_forward(images, texts, packed, tm, bp):
    B, N, F = images.shape
    O = packed["O"]

    # TODO(synk): CausalGraphLearning / CausalAttention not defined in source;
    # identity pass-through of the input features.
    def prep(x):
        x2d = x.reshape(B, N * F)
        return jnp.pad(x2d, ((0, bp - B), (0, 0)))

    x_stacked = jnp.stack([prep(images), prep(texts)]).astype(jnp.bfloat16)

    feat, scores = fused_retrieval(x_stacked, packed, tm)     # (2,Bp,N*O),(Bp,128)

    img_features = feat[0, :B].reshape(B, N, O)
    text_features = feat[1, :B].reshape(B, N, O)
    matching_scores = scores[:B, :1]
    if packed["zero_scores"]:
        matching_scores = jnp.zeros_like(matching_scores)

    return {
        "matching_scores": matching_scores,
        "img_features": img_features,
        "text_features": text_features,
    }


# ------------------------------------ main ------------------------------------

if __name__ == "__main__":
    feature_dim, hidden_dim, output_dim = 32, 32, 16
    batch, num_nodes = 2, 4

    key = jax.random.PRNGKey(0)
    k_img, k_txt, k_par = jax.random.split(key, 3)
    images = jax.random.normal(k_img, (batch, num_nodes, feature_dim), jnp.float32)
    texts = jax.random.normal(k_txt, (batch, num_nodes, feature_dim), jnp.float32)

    params = init_params(k_par, feature_dim, hidden_dim, output_dim)

    # fixed small causal DAG on num_nodes nodes; paths from 0 to num_nodes-1
    edges = [(0, 1), (1, 2), (2, 3), (0, 2), (1, 3)]
    paths = all_simple_paths(edges, 0, num_nodes - 1, num_nodes)

    packed = pack_params(params, paths, num_nodes,
                         feature_dim, hidden_dim, output_dim)
    tm, bp = _pick_row_tile(batch)

    fwd = jax.jit(functools.partial(retrieval_forward, packed=packed, tm=tm, bp=bp))
    out = fwd(images, texts)
    jax.block_until_ready(out["matching_scores"])
    jax.block_until_ready(out["img_features"])
    jax.block_until_ready(out["text_features"])

    assert out["matching_scores"].shape == (batch, 1)
    assert out["img_features"].shape == (batch, num_nodes, output_dim)
    assert out["text_features"].shape == (batch, num_nodes, output_dim)
    assert bool(jnp.all(jnp.isfinite(out["matching_scores"])))
    assert bool(jnp.all(out["matching_scores"] > 0.0))
    assert bool(jnp.all(out["matching_scores"] <= 1.0))
    assert bool(jnp.all(jnp.isfinite(out["img_features"])))
    assert bool(jnp.all(jnp.isfinite(out["text_features"])))
    print("KERNEL_OK")
</pallas_src>

<mosaic_0001>
module attributes {stable_mosaic.version = 11 : i64} {
  func.func @_fused_kernel(%arg0: i32, %arg1: memref<2x8x128xbf16, #tpu.memory_space<vmem>>, %arg2: memref<2x128x128xbf16, #tpu.memory_space<vmem>>, %arg3: memref<2x1x128xf32, #tpu.memory_space<vmem>>, %arg4: memref<2x128x64xbf16, #tpu.memory_space<vmem>>, %arg5: memref<2x1x64xf32, #tpu.memory_space<vmem>>, %arg6: memref<2x1x64xf32, #tpu.memory_space<vmem>>, %arg7: memref<2x1x64xf32, #tpu.memory_space<vmem>>, %arg8: memref<64x64xf32, #tpu.memory_space<vmem>>, %arg9: memref<64x80xbf16, #tpu.memory_space<vmem>>, %arg10: memref<1x80xf32, #tpu.memory_space<vmem>>, %arg11: memref<80x40xbf16, #tpu.memory_space<vmem>>, %arg12: memref<1x40xf32, #tpu.memory_space<vmem>>, %arg13: memref<40x48xbf16, #tpu.memory_space<vmem>>, %arg14: memref<1x48xf32, #tpu.memory_space<vmem>>, %arg15: memref<1x48xf32, #tpu.memory_space<vmem>>, %arg16: memref<48x48xbf16, #tpu.memory_space<vmem>>, %arg17: memref<1x48xf32, #tpu.memory_space<vmem>>, %arg18: memref<48x3xbf16, #tpu.memory_space<vmem>>, %arg19: memref<1x3xf32, #tpu.memory_space<vmem>>, %arg20: memref<2x8x64xf32, #tpu.memory_space<vmem>>, %arg21: memref<8x128xf32, #tpu.memory_space<vmem>>) attributes {dimension_semantics = [#tpu.dimension_semantics<parallel>], iteration_bounds = array<i64: 1>, scalar_prefetch = 0 : i64, scratch_operands = 0 : i64, tpu.core_type = #tpu.core_type<tc>, window_params = [{transform_indices = @transform_0, window_bounds = array<i64: 2, 8, 128>}, {pipeline_mode = #tpu.pipeline_mode<synchronous>, transform_indices = @transform_1, window_bounds = array<i64: 2, 128, 128>}, {pipeline_mode = #tpu.pipeline_mode<synchronous>, transform_indices = @transform_2, window_bounds = array<i64: 2, 1, 128>}, {pipeline_mode = #tpu.pipeline_mode<synchronous>, transform_indices = @transform_3, window_bounds = array<i64: 2, 128, 64>}, {pipeline_mode = #tpu.pipeline_mode<synchronous>, transform_indices = @transform_4, window_bounds = array<i64: 2, 1, 64>}, {pipeline_mode = #tpu.pipeline_mode<synchronous>, transform_indices = @transform_5, window_bounds = array<i64: 2, 1, 64>}, {pipeline_mode = #tpu.pipeline_mode<synchronous>, transform_indices = @transform_6, window_bounds = array<i64: 2, 1, 64>}, {pipeline_mode = #tpu.pipeline_mode<synchronous>, transform_indices = @transform_7, window_bounds = array<i64: 64, 64>}, {pipeline_mode = #tpu.pipeline_mode<synchronous>, transform_indices = @transform_8, window_bounds = array<i64: 64, 80>}, {pipeline_mode = #tpu.pipeline_mode<synchronous>, transform_indices = @transform_9, window_bounds = array<i64: 1, 80>}, {pipeline_mode = #tpu.pipeline_mode<synchronous>, transform_indices = @transform_10, window_bounds = array<i64: 80, 40>}, {pipeline_mode = #tpu.pipeline_mode<synchronous>, transform_indices = @transform_11, window_bounds = array<i64: 1, 40>}, {pipeline_mode = #tpu.pipeline_mode<synchronous>, transform_indices = @transform_12, window_bounds = array<i64: 40, 48>}, {pipeline_mode = #tpu.pipeline_mode<synchronous>, transform_indices = @transform_13, window_bounds = array<i64: 1, 48>}, {pipeline_mode = #tpu.pipeline_mode<synchronous>, transform_indices = @transform_14, window_bounds = array<i64: 1, 48>}, {pipeline_mode = #tpu.pipeline_mode<synchronous>, transform_indices = @transform_15, window_bounds = array<i64: 48, 48>}, {pipeline_mode = #tpu.pipeline_mode<synchronous>, transform_indices = @transform_16, window_bounds = array<i64: 1, 48>}, {pipeline_mode = #tpu.pipeline_mode<synchronous>, transform_indices = @transform_17, window_bounds = array<i64: 48, 3>}, {pipeline_mode = #tpu.pipeline_mode<synchronous>, transform_indices = @transform_18, window_bounds = array<i64: 1, 3>}, {transform_indices = @transform_19, window_bounds = array<i64: 2, 8, 64>}, {transform_indices = @transform_20, window_bounds = array<i64: 8, 128>}]} {
    %c0 = arith.constant 0 : index
    %c0_0 = arith.constant 0 : index
    %0 = vector.load %arg8[%c0, %c0_0] : memref<64x64xf32, #tpu.memory_space<vmem>>, vector<64x64xf32>
    %c0_1 = arith.constant 0 : index
    %c0_2 = arith.constant 0 : index
    %c0_3 = arith.constant 0 : index
    %1 = vector.load %arg1[%c0_1, %c0_2, %c0_3] : memref<2x8x128xbf16, #tpu.memory_space<vmem>>, vector<1x8x128xbf16>
    %2 = vector.shape_cast %1 : vector<1x8x128xbf16> to vector<8x128xbf16>
    %c0_4 = arith.constant 0 : index
    %c0_5 = arith.constant 0 : index
    %c0_6 = arith.constant 0 : index
    %3 = vector.load %arg2[%c0_4, %c0_5, %c0_6] : memref<2x128x128xbf16, #tpu.memory_space<vmem>>, vector<1x128x128xbf16>
    %4 = vector.shape_cast %3 : vector<1x128x128xbf16> to vector<128x128xbf16>
    %cst = arith.constant dense<0.000000e+00> : vector<8x128xf32>
    %5 = tpu.matmul %2, %4, %cst {dimension_numbers = #tpu.dot_dimension_numbers<[1], [0], [0], [1], [0, 0, 1, 1], [], []>} : vector<8x128xbf16>, vector<128x128xbf16>, vector<8x128xf32> -> vector<8x128xf32>
    %c0_7 = arith.constant 0 : index
    %c0_8 = arith.constant 0 : index
    %c0_9 = arith.constant 0 : index
    %6 = vector.load %arg3[%c0_7, %c0_8, %c0_9] : memref<2x1x128xf32, #tpu.memory_space<vmem>>, vector<1x1x128xf32>
    %7 = vector.shape_cast %6 : vector<1x1x128xf32> to vector<1x128xf32>
    %8 = vector.broadcast %7 : vector<1x128xf32> to vector<8x128xf32>
    %9 = arith.addf %5, %8 : vector<8x128xf32>
    %cst_10 = arith.constant 0.000000e+00 : f32
    %10 = vector.broadcast %cst_10 : f32 to vector<8x128xf32>
    %11 = arith.maximumf %9, %10 : vector<8x128xf32>
    %12 = arith.truncf %11 : vector<8x128xf32> to vector<8x128xbf16>
    %c0_11 = arith.constant 0 : index
    %c0_12 = arith.constant 0 : index
    %c0_13 = arith.constant 0 : index
    %13 = vector.load %arg4[%c0_11, %c0_12, %c0_13] : memref<2x128x64xbf16, #tpu.memory_space<vmem>>, vector<1x128x64xbf16>
    %14 = vector.shape_cast %13 : vector<1x128x64xbf16> to vector<128x64xbf16>
    %cst_14 = arith.constant dense<0.000000e+00> : vector<8x64xf32>
    %15 = tpu.matmul %12, %14, %cst_14 {dimension_numbers = #tpu.dot_dimension_numbers<[1], [0], [0], [1], [0, 0, 1, 1], [], []>} : vector<8x128xbf16>, vector<128x64xbf16>, vector<8x64xf32> -> vector<8x64xf32>
    %c0_15 = arith.constant 0 : index
    %c0_16 = arith.constant 0 : index
    %c0_17 = arith.constant 0 : index
    %16 = vector.load %arg5[%c0_15, %c0_16, %c0_17] : memref<2x1x64xf32, #tpu.memory_space<vmem>>, vector<1x1x64xf32>
    %17 = vector.shape_cast %16 : vector<1x1x64xf32> to vector<1x64xf32>
    %18 = vector.broadcast %17 : vector<1x64xf32> to vector<8x64xf32>
    %19 = arith.addf %15, %18 : vector<8x64xf32>
    %cst_18 = arith.constant dense<0.000000e+00> : vector<8x64xf32>
    %20 = tpu.matmul %19, %0, %cst_18 {dimension_numbers = #tpu.dot_dimension_numbers<[1], [0], [0], [1], [0, 0, 1, 1], [], []>} : vector<8x64xf32>, vector<64x64xf32>, vector<8x64xf32> -> vector<8x64xf32>
    %21 = arith.subf %19, %20 : vector<8x64xf32>
    %22 = arith.mulf %21, %21 : vector<8x64xf32>
    %cst_19 = arith.constant dense<0.000000e+00> : vector<8x64xf32>
    %23 = tpu.matmul %22, %0, %cst_19 {dimension_numbers = #tpu.dot_dimension_numbers<[1], [0], [0], [1], [0, 0, 1, 1], [], []>} : vector<8x64xf32>, vector<64x64xf32>, vector<8x64xf32> -> vector<8x64xf32>
    %cst_20 = arith.constant 9.99999974E-6 : f32
    %24 = vector.broadcast %cst_20 : f32 to vector<8x64xf32>
    %25 = arith.addf %23, %24 : vector<8x64xf32>
    %26 = math.rsqrt %25 : vector<8x64xf32>
    %27 = arith.mulf %21, %26 : vector<8x64xf32>
    %c0_21 = arith.constant 0 : index
    %c0_22 = arith.constant 0 : index
    %c0_23 = arith.constant 0 : index
    %28 = vector.load %arg6[%c0_21, %c0_22, %c0_23] : memref<2x1x64xf32, #tpu.memory_space<vmem>>, vector<1x1x64xf32>
    %29 = vector.shape_cast %28 : vector<1x1x64xf32> to vector<1x64xf32>
    %30 = vector.broadcast %29 : vector<1x64xf32> to vector<8x64xf32>
    %31 = arith.mulf %27, %30 : vector<8x64xf32>
    %c0_24 = arith.constant 0 : index
    %c0_25 = arith.constant 0 : index
    %c0_26 = arith.constant 0 : index
    %32 = vector.load %arg7[%c0_24, %c0_25, %c0_26] : memref<2x1x64xf32, #tpu.memory_space<vmem>>, vector<1x1x64xf32>
    %33 = vector.shape_cast %32 : vector<1x1x64xf32> to vector<1x64xf32>
    %34 = vector.broadcast %33 : vector<1x64xf32> to vector<8x64xf32>
    %35 = arith.addf %31, %34 : vector<8x64xf32>
    %c1 = arith.constant 1 : index
    %c0_27 = arith.constant 0 : index
    %c0_28 = arith.constant 0 : index
    %36 = vector.load %arg1[%c1, %c0_27, %c0_28] : memref<2x8x128xbf16, #tpu.memory_space<vmem>>, vector<1x8x128xbf16>
    %37 = vector.shape_cast %36 : vector<1x8x128xbf16> to vector<8x128xbf16>
    %c1_29 = arith.constant 1 : index
    %c0_30 = arith.constant 0 : index
    %c0_31 = arith.constant 0 : index
    %38 = vector.load %arg2[%c1_29, %c0_30, %c0_31] : memref<2x128x128xbf16, #tpu.memory_space<vmem>>, vector<1x128x128xbf16>
    %39 = vector.shape_cast %38 : vector<1x128x128xbf16> to vector<128x128xbf16>
    %cst_32 = arith.constant dense<0.000000e+00> : vector<8x128xf32>
    %40 = tpu.matmul %37, %39, %cst_32 {dimension_numbers = #tpu.dot_dimension_numbers<[1], [0], [0], [1], [0, 0, 1, 1], [], []>} : vector<8x128xbf16>, vector<128x128xbf16>, vector<8x128xf32> -> vector<8x128xf32>
    %c1_33 = arith.constant 1 : index
    %c0_34 = arith.constant 0 : index
    %c0_35 = arith.constant 0 : index
    %41 = vector.load %arg3[%c1_33, %c0_34, %c0_35] : memref<2x1x128xf32, #tpu.memory_space<vmem>>, vector<1x1x128xf32>
    %42 = vector.shape_cast %41 : vector<1x1x128xf32> to vector<1x128xf32>
    %43 = vector.broadcast %42 : vector<1x128xf32> to vector<8x128xf32>
    %44 = arith.addf %40, %43 : vector<8x128xf32>
    %cst_36 = arith.constant 0.000000e+00 : f32
    %45 = vector.broadcast %cst_36 : f32 to vector<8x128xf32>
    %46 = arith.maximumf %44, %45 : vector<8x128xf32>
    %47 = arith.truncf %46 : vector<8x128xf32> to vector<8x128xbf16>
    %c1_37 = arith.constant 1 : index
    %c0_38 = arith.constant 0 : index
    %c0_39 = arith.constant 0 : index
    %48 = vector.load %arg4[%c1_37, %c0_38, %c0_39] : memref<2x128x64xbf16, #tpu.memory_space<vmem>>, vector<1x128x64xbf16>
    %49 = vector.shape_cast %48 : vector<1x128x64xbf16> to vector<128x64xbf16>
    %cst_40 = arith.constant dense<0.000000e+00> : vector<8x64xf32>
    %50 = tpu.matmul %47, %49, %cst_40 {dimension_numbers = #tpu.dot_dimension_numbers<[1], [0], [0], [1], [0, 0, 1, 1], [], []>} : vector<8x128xbf16>, vector<128x64xbf16>, vector<8x64xf32> -> vector<8x64xf32>
    %c1_41 = arith.constant 1 : index
    %c0_42 = arith.constant 0 : index
    %c0_43 = arith.constant 0 : index
    %51 = vector.load %arg5[%c1_41, %c0_42, %c0_43] : memref<2x1x64xf32, #tpu.memory_space<vmem>>, vector<1x1x64xf32>
    %52 = vector.shape_cast %51 : vector<1x1x64xf32> to vector<1x64xf32>
    %53 = vector.broadcast %52 : vector<1x64xf32> to vector<8x64xf32>
    %54 = arith.addf %50, %53 : vector<8x64xf32>
    %cst_44 = arith.constant dense<0.000000e+00> : vector<8x64xf32>
    %55 = tpu.matmul %54, %0, %cst_44 {dimension_numbers = #tpu.dot_dimension_numbers<[1], [0], [0], [1], [0, 0, 1, 1], [], []>} : vector<8x64xf32>, vector<64x64xf32>, vector<8x64xf32> -> vector<8x64xf32>
    %56 = arith.subf %54, %55 : vector<8x64xf32>
    %57 = arith.mulf %56, %56 : vector<8x64xf32>
    %cst_45 = arith.constant dense<0.000000e+00> : vector<8x64xf32>
    %58 = tpu.matmul %57, %0, %cst_45 {dimension_numbers = #tpu.dot_dimension_numbers<[1], [0], [0], [1], [0, 0, 1, 1], [], []>} : vector<8x64xf32>, vector<64x64xf32>, vector<8x64xf32> -> vector<8x64xf32>
    %cst_46 = arith.constant 9.99999974E-6 : f32
    %59 = vector.broadcast %cst_46 : f32 to vector<8x64xf32>
    %60 = arith.addf %58, %59 : vector<8x64xf32>
    %61 = math.rsqrt %60 : vector<8x64xf32>
    %62 = arith.mulf %56, %61 : vector<8x64xf32>
    %c1_47 = arith.constant 1 : index
    %c0_48 = arith.constant 0 : index
    %c0_49 = arith.constant 0 : index
    %63 = vector.load %arg6[%c1_47, %c0_48, %c0_49] : memref<2x1x64xf32, #tpu.memory_space<vmem>>, vector<1x1x64xf32>
    %64 = vector.shape_cast %63 : vector<1x1x64xf32> to vector<1x64xf32>
    %65 = vector.broadcast %64 : vector<1x64xf32> to vector<8x64xf32>
    %66 = arith.mulf %62, %65 : vector<8x64xf32>
    %c1_50 = arith.constant 1 : index
    %c0_51 = arith.constant 0 : index
    %c0_52 = arith.constant 0 : index
    %67 = vector.load %arg7[%c1_50, %c0_51, %c0_52] : memref<2x1x64xf32, #tpu.memory_space<vmem>>, vector<1x1x64xf32>
    %68 = vector.shape_cast %67 : vector<1x1x64xf32> to vector<1x64xf32>
    %69 = vector.broadcast %68 : vector<1x64xf32> to vector<8x64xf32>
    %70 = arith.addf %66, %69 : vector<8x64xf32>
    %c0_53 = arith.constant 0 : index
    %c0_54 = arith.constant 0 : index
    %c0_55 = arith.constant 0 : index
    %71 = vector.load %arg20[%c0_53, %c0_54, %c0_55] : memref<2x8x64xf32, #tpu.memory_space<vmem>>, vector<1x8x64xf32>
    %72 = vector.shape_cast %71 : vector<1x8x64xf32> to vector<8x64xf32>
    %73 = vector.shape_cast %35 : vector<8x64xf32> to vector<1x8x64xf32>
    tpu.vector_store %arg20[%c0_53, %c0_54, %c0_55], %73 {strides = array<i32>} : memref<2x8x64xf32, #tpu.memory_space<vmem>>, vector<1x8x64xf32>,
    %c1_56 = arith.constant 1 : index
    %c0_57 = arith.constant 0 : index
    %c0_58 = arith.constant 0 : index
    %74 = vector.load %arg20[%c1_56, %c0_57, %c0_58] : memref<2x8x64xf32, #tpu.memory_space<vmem>>, vector<1x8x64xf32>
    %75 = vector.shape_cast %74 : vector<1x8x64xf32> to vector<8x64xf32>
    %76 = vector.shape_cast %70 : vector<8x64xf32> to vector<1x8x64xf32>
    tpu.vector_store %arg20[%c1_56, %c0_57, %c0_58], %76 {strides = array<i32>} : memref<2x8x64xf32, #tpu.memory_space<vmem>>, vector<1x8x64xf32>,
    %77 = arith.truncf %35 : vector<8x64xf32> to vector<8x64xbf16>
    %c0_59 = arith.constant 0 : index
    %c0_60 = arith.constant 0 : index
    %78 = vector.load %arg9[%c0_59, %c0_60] : memref<64x80xbf16, #tpu.memory_space<vmem>>, vector<64x80xbf16>
    %cst_61 = arith.constant dense<0.000000e+00> : vector<8x80xf32>
    %79 = tpu.matmul %77, %78, %cst_61 {dimension_numbers = #tpu.dot_dimension_numbers<[1], [0], [0], [1], [0, 0, 1, 1], [], []>} : vector<8x64xbf16>, vector<64x80xbf16>, vector<8x80xf32> -> vector<8x80xf32>
    %c0_62 = arith.constant 0 : index
    %c0_63 = arith.constant 0 : index
    %80 = vector.load %arg10[%c0_62, %c0_63] : memref<1x80xf32, #tpu.memory_space<vmem>>, vector<1x80xf32>
    %81 = vector.broadcast %80 : vector<1x80xf32> to vector<8x80xf32>
    %82 = arith.addf %79, %81 : vector<8x80xf32>
    %cst_64 = arith.constant 0.000000e+00 : f32
    %83 = vector.broadcast %cst_64 : f32 to vector<8x80xf32>
    %84 = arith.maximumf %82, %83 : vector<8x80xf32>
    %85 = arith.truncf %84 : vector<8x80xf32> to vector<8x80xbf16>
    %c0_65 = arith.constant 0 : index
    %c0_66 = arith.constant 0 : index
    %86 = vector.load %arg11[%c0_65, %c0_66] : memref<80x40xbf16, #tpu.memory_space<vmem>>, vector<80x40xbf16>
    %cst_67 = arith.constant dense<0.000000e+00> : vector<8x40xf32>
    %87 = tpu.matmul %85, %86, %cst_67 {dimension_numbers = #tpu.dot_dimension_numbers<[1], [0], [0], [1], [0, 0, 1, 1], [], []>} : vector<8x80xbf16>, vector<80x40xbf16>, vector<8x40xf32> -> vector<8x40xf32>
    %c0_68 = arith.constant 0 : index
    %c0_69 = arith.constant 0 : index
    %88 = vector.load %arg12[%c0_68, %c0_69] : memref<1x40xf32, #tpu.memory_space<vmem>>, vector<1x40xf32>
    %89 = vector.broadcast %88 : vector<1x40xf32> to vector<8x40xf32>
    %90 = arith.addf %87, %89 : vector<8x40xf32>
    %cst_70 = arith.constant 0.000000e+00 : f32
    %91 = vector.broadcast %cst_70 : f32 to vector<8x40xf32>
    %92 = arith.maximumf %90, %91 : vector<8x40xf32>
    %c0_71 = arith.constant 0 : index
    %c0_72 = arith.constant 0 : index
    %93 = vector.load %arg15[%c0_71, %c0_72] : memref<1x48xf32, #tpu.memory_space<vmem>>, vector<1x48xf32>
    %94 = arith.truncf %92 : vector<8x40xf32> to vector<8x40xbf16>
    %c0_73 = arith.constant 0 : index
    %c0_74 = arith.constant 0 : index
    %95 = vector.load %arg13[%c0_73, %c0_74] : memref<40x48xbf16, #tpu.memory_space<vmem>>, vector<40x48xbf16>
    %cst_75 = arith.constant dense<0.000000e+00> : vector<8x48xf32>
    %96 = tpu.matmul %94, %95, %cst_75 {dimension_numbers = #tpu.dot_dimension_numbers<[1], [0], [0], [1], [0, 0, 1, 1], [], []>} : vector<8x40xbf16>, vector<40x48xbf16>, vector<8x48xf32> -> vector<8x48xf32>
    %c0_76 = arith.constant 0 : index
    %c0_77 = arith.constant 0 : index
    %97 = vector.load %arg14[%c0_76, %c0_77] : memref<1x48xf32, #tpu.memory_space<vmem>>, vector<1x48xf32>
    %98 = vector.broadcast %97 : vector<1x48xf32> to vector<8x48xf32>
    %99 = arith.addf %96, %98 : vector<8x48xf32>
    %100 = arith.negf %99 : vector<8x48xf32>
    %101 = math.exp %100 : vector<8x48xf32>
    %cst_78 = arith.constant 1.000000e+00 : f32
    %102 = vector.broadcast %cst_78 : f32 to vector<8x48xf32>
    %103 = arith.addf %102, %101 : vector<8x48xf32>
    %104 = arith.divf %102, %103 : vector<8x48xf32>
    %105 = vector.broadcast %93 : vector<1x48xf32> to vector<8x48xf32>
    %106 = arith.mulf %105, %104 : vector<8x48xf32>
    %107 = arith.truncf %106 : vector<8x48xf32> to vector<8x48xbf16>
    %c0_79 = arith.constant 0 : index
    %c0_80 = arith.constant 0 : index
    %108 = vector.load %arg16[%c0_79, %c0_80] : memref<48x48xbf16, #tpu.memory_space<vmem>>, vector<48x48xbf16>
    %cst_81 = arith.constant dense<0.000000e+00> : vector<8x48xf32>
    %109 = tpu.matmul %107, %108, %cst_81 {dimension_numbers = #tpu.dot_dimension_numbers<[1], [0], [0], [1], [0, 0, 1, 1], [], []>} : vector<8x48xbf16>, vector<48x48xbf16>, vector<8x48xf32> -> vector<8x48xf32>
    %c0_82 = arith.constant 0 : index
    %c0_83 = arith.constant 0 : index
    %110 = vector.load %arg17[%c0_82, %c0_83] : memref<1x48xf32, #tpu.memory_space<vmem>>, vector<1x48xf32>
    %111 = vector.broadcast %110 : vector<1x48xf32> to vector<8x48xf32>
    %112 = arith.addf %109, %111 : vector<8x48xf32>
    %cst_84 = arith.constant 0.000000e+00 : f32
    %113 = vector.broadcast %cst_84 : f32 to vector<8x48xf32>
    %114 = arith.maximumf %112, %113 : vector<8x48xf32>
    %115 = arith.truncf %114 : vector<8x48xf32> to vector<8x48xbf16>
    %c0_85 = arith.constant 0 : index
    %c0_86 = arith.constant 0 : index
    %116 = vector.load %arg18[%c0_85, %c0_86] : memref<48x3xbf16, #tpu.memory_space<vmem>>, vector<48x3xbf16>
    %cst_87 = arith.constant dense<0.000000e+00> : vector<8x3xf32>
    %117 = tpu.matmul %115, %116, %cst_87 {dimension_numbers = #tpu.dot_dimension_numbers<[1], [0], [0], [1], [0, 0, 1, 1], [], []>} : vector<8x48xbf16>, vector<48x3xbf16>, vector<8x3xf32> -> vector<8x3xf32>
    %c0_88 = arith.constant 0 : index
    %c0_89 = arith.constant 0 : index
    %118 = vector.load %arg19[%c0_88, %c0_89] : memref<1x3xf32, #tpu.memory_space<vmem>>, vector<1x3xf32>
    %119 = vector.broadcast %118 : vector<1x3xf32> to vector<8x3xf32>
    %120 = arith.addf %117, %119 : vector<8x3xf32>
    %121 = arith.negf %120 : vector<8x3xf32>
    %122 = math.exp %121 : vector<8x3xf32>
    %cst_90 = arith.constant 1.000000e+00 : f32
    %123 = vector.broadcast %cst_90 : f32 to vector<8x3xf32>
    %124 = arith.addf %123, %122 : vector<8x3xf32>
    %125 = arith.divf %123, %124 : vector<8x3xf32>
    %126 = arith.truncf %70 : vector<8x64xf32> to vector<8x64xbf16>
    %c0_91 = arith.constant 0 : index
    %c0_92 = arith.constant 0 : index
    %127 = vector.load %arg9[%c0_91, %c0_92] : memref<64x80xbf16, #tpu.memory_space<vmem>>, vector<64x80xbf16>
    %cst_93 = arith.constant dense<0.000000e+00> : vector<8x80xf32>
    %128 = tpu.matmul %126, %127, %cst_93 {dimension_numbers = #tpu.dot_dimension_numbers<[1], [0], [0], [1], [0, 0, 1, 1], [], []>} : vector<8x64xbf16>, vector<64x80xbf16>, vector<8x80xf32> -> vector<8x80xf32>
    %c0_94 = arith.constant 0 : index
    %c0_95 = arith.constant 0 : index
    %129 = vector.load %arg10[%c0_94, %c0_95] : memref<1x80xf32, #tpu.memory_space<vmem>>, vector<1x80xf32>
    %130 = vector.broadcast %129 : vector<1x80xf32> to vector<8x80xf32>
    %131 = arith.addf %128, %130 : vector<8x80xf32>
    %cst_96 = arith.constant 0.000000e+00 : f32
    %132 = vector.broadcast %cst_96 : f32 to vector<8x80xf32>
    %133 = arith.maximumf %131, %132 : vector<8x80xf32>
    %134 = arith.truncf %133 : vector<8x80xf32> to vector<8x80xbf16>
    %c0_97 = arith.constant 0 : index
    %c0_98 = arith.constant 0 : index
    %135 = vector.load %arg11[%c0_97, %c0_98] : memref<80x40xbf16, #tpu.memory_space<vmem>>, vector<80x40xbf16>
    %cst_99 = arith.constant dense<0.000000e+00> : vector<8x40xf32>
    %136 = tpu.matmul %134, %135, %cst_99 {dimension_numbers = #tpu.dot_dimension_numbers<[1], [0], [0], [1], [0, 0, 1, 1], [], []>} : vector<8x80xbf16>, vector<80x40xbf16>, vector<8x40xf32> -> vector<8x40xf32>
    %c0_100 = arith.constant 0 : index
    %c0_101 = arith.constant 0 : index
    %137 = vector.load %arg12[%c0_100, %c0_101] : memref<1x40xf32, #tpu.memory_space<vmem>>, vector<1x40xf32>
    %138 = vector.broadcast %137 : vector<1x40xf32> to vector<8x40xf32>
    %139 = arith.addf %136, %138 : vector<8x40xf32>
    %cst_102 = arith.constant 0.000000e+00 : f32
    %140 = vector.broadcast %cst_102 : f32 to vector<8x40xf32>
    %141 = arith.maximumf %139, %140 : vector<8x40xf32>
    %c0_103 = arith.constant 0 : index
    %c0_104 = arith.constant 0 : index
    %142 = vector.load %arg15[%c0_103, %c0_104] : memref<1x48xf32, #tpu.memory_space<vmem>>, vector<1x48xf32>
    %143 = arith.truncf %141 : vector<8x40xf32> to vector<8x40xbf16>
    %c0_105 = arith.constant 0 : index
    %c0_106 = arith.constant 0 : index
    %144 = vector.load %arg13[%c0_105, %c0_106] : memref<40x48xbf16, #tpu.memory_space<vmem>>, vector<40x48xbf16>
    %cst_107 = arith.constant dense<0.000000e+00> : vector<8x48xf32>
    %145 = tpu.matmul %143, %144, %cst_107 {dimension_numbers = #tpu.dot_dimension_numbers<[1], [0], [0], [1], [0, 0, 1, 1], [], []>} : vector<8x40xbf16>, vector<40x48xbf16>, vector<8x48xf32> -> vector<8x48xf32>
    %c0_108 = arith.constant 0 : index
    %c0_109 = arith.constant 0 : index
    %146 = vector.load %arg14[%c0_108, %c0_109] : memref<1x48xf32, #tpu.memory_space<vmem>>, vector<1x48xf32>
    %147 = vector.broadcast %146 : vector<1x48xf32> to vector<8x48xf32>
    %148 = arith.addf %145, %147 : vector<8x48xf32>
    %149 = arith.negf %148 : vector<8x48xf32>
    %150 = math.exp %149 : vector<8x48xf32>
    %cst_110 = arith.constant 1.000000e+00 : f32
    %151 = vector.broadcast %cst_110 : f32 to vector<8x48xf32>
    %152 = arith.addf %151, %150 : vector<8x48xf32>
    %153 = arith.divf %151, %152 : vector<8x48xf32>
    %154 = vector.broadcast %142 : vector<1x48xf32> to vector<8x48xf32>
    %155 = arith.mulf %154, %153 : vector<8x48xf32>
    %156 = arith.truncf %155 : vector<8x48xf32> to vector<8x48xbf16>
    %c0_111 = arith.constant 0 : index
    %c0_112 = arith.constant 0 : index
    %157 = vector.load %arg16[%c0_111, %c0_112] : memref<48x48xbf16, #tpu.memory_space<vmem>>, vector<48x48xbf16>
    %cst_113 = arith.constant dense<0.000000e+00> : vector<8x48xf32>
    %158 = tpu.matmul %156, %157, %cst_113 {dimension_numbers = #tpu.dot_dimension_numbers<[1], [0], [0], [1], [0, 0, 1, 1], [], []>} : vector<8x48xbf16>, vector<48x48xbf16>, vector<8x48xf32> -> vector<8x48xf32>
    %c0_114 = arith.constant 0 : index
    %c0_115 = arith.constant 0 : index
    %159 = vector.load %arg17[%c0_114, %c0_115] : memref<1x48xf32, #tpu.memory_space<vmem>>, vector<1x48xf32>
    %160 = vector.broadcast %159 : vector<1x48xf32> to vector<8x48xf32>
    %161 = arith.addf %158, %160 : vector<8x48xf32>
    %cst_116 = arith.constant 0.000000e+00 : f32
    %162 = vector.broadcast %cst_116 : f32 to vector<8x48xf32>
    %163 = arith.maximumf %161, %162 : vector<8x48xf32>
    %164 = arith.truncf %163 : vector<8x48xf32> to vector<8x48xbf16>
    %c0_117 = arith.constant 0 : index
    %c0_118 = arith.constant 0 : index
    %165 = vector.load %arg18[%c0_117, %c0_118] : memref<48x3xbf16, #tpu.memory_space<vmem>>, vector<48x3xbf16>
    %cst_119 = arith.constant dense<0.000000e+00> : vector<8x3xf32>
    %166 = tpu.matmul %164, %165, %cst_119 {dimension_numbers = #tpu.dot_dimension_numbers<[1], [0], [0], [1], [0, 0, 1, 1], [], []>} : vector<8x48xbf16>, vector<48x3xbf16>, vector<8x3xf32> -> vector<8x3xf32>
    %c0_120 = arith.constant 0 : index
    %c0_121 = arith.constant 0 : index
    %167 = vector.load %arg19[%c0_120, %c0_121] : memref<1x3xf32, #tpu.memory_space<vmem>>, vector<1x3xf32>
    %168 = vector.broadcast %167 : vector<1x3xf32> to vector<8x3xf32>
    %169 = arith.addf %166, %168 : vector<8x3xf32>
    %170 = arith.negf %169 : vector<8x3xf32>
    %171 = math.exp %170 : vector<8x3xf32>
    %cst_122 = arith.constant 1.000000e+00 : f32
    %172 = vector.broadcast %cst_122 : f32 to vector<8x3xf32>
    %173 = arith.addf %172, %171 : vector<8x3xf32>
    %174 = arith.divf %172, %173 : vector<8x3xf32>
    %175 = arith.mulf %125, %174 : vector<8x3xf32>
    %176 = math.sqrt %175 : vector<8x3xf32>
    %cst_123 = arith.constant dense<0xFF800000> : vector<8xf32>
    %177 = vector.multi_reduction <maximumf>, %176, %cst_123 [1] : vector<8x3xf32> to vector<8xf32>
    %178 = vector.shape_cast %177 : vector<8xf32> to vector<8x1xf32>
    %179 = vector.shape_cast %178 : vector<8x1xf32> to vector<8x1xf32>
    %180 = vector.broadcast %179 : vector<8x1xf32> to vector<8x128xf32>
    %c0_124 = arith.constant 0 : index
    %c0_125 = arith.constant 0 : index
    %181 = vector.load %arg21[%c0_124, %c0_125] : memref<8x128xf32, #tpu.memory_space<vmem>>, vector<8x128xf32>
    tpu.vector_store %arg21[%c0_124, %c0_125], %180 {strides = array<i32>} : memref<8x128xf32, #tpu.memory_space<vmem>>, vector<8x128xf32>,
    return
  }
  func.func @transform_0(%arg0: i32) -> (i32, i32, i32) {
    %c0_i32 = arith.constant 0 : i32
    %c0_i32_0 = arith.constant 0 : i32
    %c0_i32_1 = arith.constant 0 : i32
    return %c0_i32, %arg0, %c0_i32_0 : i32, i32, i32
  }
  func.func @transform_1(%arg0: i32) -> (i32, i32, i32) {
    %c0_i32 = arith.constant 0 : i32
    %c0_i32_0 = arith.constant 0 : i32
    %c0_i32_1 = arith.constant 0 : i32
    %c0_i32_2 = arith.constant 0 : i32
    return %c0_i32, %c0_i32_0, %c0_i32_1 : i32, i32, i32
  }
  func.func @transform_2(%arg0: i32) -> (i32, i32, i32) {
    %c0_i32 = arith.constant 0 : i32
    %c0_i32_0 = arith.constant 0 : i32
    %c0_i32_1 = arith.constant 0 : i32
    %c0_i32_2 = arith.constant 0 : i32
    return %c0_i32, %c0_i32_0, %c0_i32_1 : i32, i32, i32
  }
  func.func @transform_3(%arg0: i32) -> (i32, i32, i32) {
    %c0_i32 = arith.constant 0 : i32
    %c0_i32_0 = arith.constant 0 : i32
    %c0_i32_1 = arith.constant 0 : i32
    %c0_i32_2 = arith.constant 0 : i32
    return %c0_i32, %c0_i32_0, %c0_i32_1 : i32, i32, i32
  }
  func.func @transform_4(%arg0: i32) -> (i32, i32, i32) {
    %c0_i32 = arith.constant 0 : i32
    %c0_i32_0 = arith.constant 0 : i32
    %c0_i32_1 = arith.constant 0 : i32
    %c0_i32_2 = arith.constant 0 : i32
    return %c0_i32, %c0_i32_0, %c0_i32_1 : i32, i32, i32
  }
  func.func @transform_5(%arg0: i32) -> (i32, i32, i32) {
    %c0_i32 = arith.constant 0 : i32
    %c0_i32_0 = arith.constant 0 : i32
    %c0_i32_1 = arith.constant 0 : i32
    %c0_i32_2 = arith.constant 0 : i32
    return %c0_i32, %c0_i32_0, %c0_i32_1 : i32, i32, i32
  }
  func.func @transform_6(%arg0: i32) -> (i32, i32, i32) {
    %c0_i32 = arith.constant 0 : i32
    %c0_i32_0 = arith.constant 0 : i32
    %c0_i32_1 = arith.constant 0 : i32
    %c0_i32_2 = arith.constant 0 : i32
    return %c0_i32, %c0_i32_0, %c0_i32_1 : i32, i32, i32
  }
  func.func @transform_7(%arg0: i32) -> (i32, i32) {
    %c0_i32 = arith.constant 0 : i32
    %c0_i32_0 = arith.constant 0 : i32
    %c0_i32_1 = arith.constant 0 : i32
    return %c0_i32, %c0_i32_0 : i32, i32
  }
  func.func @transform_8(%arg0: i32) -> (i32, i32) {
    %c0_i32 = arith.constant 0 : i32
    %c0_i32_0 = arith.constant 0 : i32
    %c0_i32_1 = arith.constant 0 : i32
    return %c0_i32, %c0_i32_0 : i32, i32
  }
  func.func @transform_9(%arg0: i32) -> (i32, i32) {
    %c0_i32 = arith.constant 0 : i32
    %c0_i32_0 = arith.constant 0 : i32
    %c0_i32_1 = arith.constant 0 : i32
    return %c0_i32, %c0_i32_0 : i32, i32
  }
  func.func @transform_10(%arg0: i32) -> (i32, i32) {
    %c0_i32 = arith.constant 0 : i32
    %c0_i32_0 = arith.constant 0 : i32
    %c0_i32_1 = arith.constant 0 : i32
    return %c0_i32, %c0_i32_0 : i32, i32
  }
  func.func @transform_11(%arg0: i32) -> (i32, i32) {
    %c0_i32 = arith.constant 0 : i32
    %c0_i32_0 = arith.constant 0 : i32
    %c0_i32_1 = arith.constant 0 : i32
    return %c0_i32, %c0_i32_0 : i32, i32
  }
  func.func @transform_12(%arg0: i32) -> (i32, i32) {
    %c0_i32 = arith.constant 0 : i32
    %c0_i32_0 = arith.constant 0 : i32
    %c0_i32_1 = arith.constant 0 : i32
    return %c0_i32, %c0_i32_0 : i32, i32
  }
  func.func @transform_13(%arg0: i32) -> (i32, i32) {
    %c0_i32 = arith.constant 0 : i32
    %c0_i32_0 = arith.constant 0 : i32
    %c0_i32_1 = arith.constant 0 : i32
    return %c0_i32, %c0_i32_0 : i32, i32
  }
  func.func @transform_14(%arg0: i32) -> (i32, i32) {
    %c0_i32 = arith.constant 0 : i32
    %c0_i32_0 = arith.constant 0 : i32
    %c0_i32_1 = arith.constant 0 : i32
    return %c0_i32, %c0_i32_0 : i32, i32
  }
  func.func @transform_15(%arg0: i32) -> (i32, i32) {
    %c0_i32 = arith.constant 0 : i32
    %c0_i32_0 = arith.constant 0 : i32
    %c0_i32_1 = arith.constant 0 : i32
    return %c0_i32, %c0_i32_0 : i32, i32
  }
  func.func @transform_16(%arg0: i32) -> (i32, i32) {
    %c0_i32 = arith.constant 0 : i32
    %c0_i32_0 = arith.constant 0 : i32
    %c0_i32_1 = arith.constant 0 : i32
    return %c0_i32, %c0_i32_0 : i32, i32
  }
  func.func @transform_17(%arg0: i32) -> (i32, i32) {
    %c0_i32 = arith.constant 0 : i32
    %c0_i32_0 = arith.constant 0 : i32
    %c0_i32_1 = arith.constant 0 : i32
    return %c0_i32, %c0_i32_0 : i32, i32
  }
  func.func @transform_18(%arg0: i32) -> (i32, i32) {
    %c0_i32 = arith.constant 0 : i32
    %c0_i32_0 = arith.constant 0 : i32
    %c0_i32_1 = arith.constant 0 : i32
    return %c0_i32, %c0_i32_0 : i32, i32
  }
  func.func @transform_19(%arg0: i32) -> (i32, i32, i32) {
    %c0_i32 = arith.constant 0 : i32
    %c0_i32_0 = arith.constant 0 : i32
    %c0_i32_1 = arith.constant 0 : i32
    return %c0_i32, %arg0, %c0_i32_0 : i32, i32, i32
  }
  func.func @transform_20(%arg0: i32) -> (i32, i32) {
    %c0_i32 = arith.constant 0 : i32
    %c0_i32_0 = arith.constant 0 : i32
    return %arg0, %c0_i32 : i32, i32
  }
}

</mosaic_0001>

<llo_original>
// kernel: squeeze.3
$region0: #{squeeze.3}
  %s0 = inlined_call_operand.vmem [shape: f32[1,2,64], index: 0, kind: input, shape index: {}]
  %s1 = inlined_call_operand.hbm [shape: f32[2,4,16], index: 1, kind: output, shape index: {}]
  $region1: #{squeeze.3} parent=0
    #allocation0 [shape = 'u8[4096]{0}', space=vmem, size = 0x1000, scoped, tag = 'operand span for operand 1']
    #allocation1 [shape = 's32[1]{0}', space=sflag, size = 0x4, scoped, tag = 'scoped memory for squeeze.3']
    #allocation2 [shape = 'u8[8192]{0}', space=vmem, size = 0x2000, scoped, tag = 'scoped mem for output reshape']
    #allocation3 [shape = 'u8[4096]{0}', space=vmem, size = 0x1000, scoped, tag = 'scoped mem for input reshape']
    %2 = vsyncpa [#allocation1], 0
    %s4 = sshllo.u32 0, 2
    %v5 = vld [vmem:[%s0] sm:%s4]
    %6 = vst [vmem:[#allocation3] sm:%s4] %v5
    %v7 = vld [vmem:[#allocation3] sm:$0x3]
    %vm8 = vcmask 130048
    %9 = vst.msk [vmem:[#allocation2] ss:$8 sm:$0x3] %vm8, %v7
    %v10 = vld [vmem:[#allocation3] sm:$0x3]
    %11 = vrot.lane.b32.xlu0 %v10, 112
    %v12 = vpop.permute.xlu0 %11
    %vm13 = vcmask 130048
    %s14 = scalar_lea.vmem [#allocation2], 1
    %15 = vst.msk [vmem:[%s14] ss:$8 sm:$0x3] %vm13, %v12
    %v16 = vld [vmem:[#allocation3] sm:$0x3]
    %17 = vrot.lane.b32.xlu0 %v16, 96
    %v18 = vpop.permute.xlu0 %17
    %vm19 = vcmask 130048
    %s20 = scalar_lea.vmem [#allocation2], 2
    %21 = vst.msk [vmem:[%s20] ss:$8 sm:$0x3] %vm19, %v18
    %v22 = vld [vmem:[#allocation3] sm:$0x3]
    %23 = vrot.lane.b32.xlu0 %v22, 80
    %v24 = vpop.permute.xlu0 %23
    %vm25 = vcmask 130048
    %s26 = scalar_lea.vmem [#allocation2], 3
    %27 = vst.msk [vmem:[%s26] ss:$8 sm:$0x3] %vm25, %v24
    %s29 = sshllo.u32 0, 4
    %v31 = vld [vmem:[#allocation2] sm:%s29]
    %s32 = sshllo.u32 0, 4
    %33 = vst [vmem:[#allocation0] sm:%s32] %v31
    %s34 = scalar_lea.vmem [#allocation2], 8
    %v35 = vld [vmem:[%s34] sm:%s29]
    %s36 = sshllo.u32 0, 4
    %s37 = scalar_lea.vmem [#allocation0], 4
    %38 = vst [vmem:[%s37] sm:%s36] %v35
    %s40 = ssub.s32 128, 128
    %41 = vsyncadd [#allocation1], %s40
    %s43 = sshll.u32 [#allocation0], 4
    %s44 = int_to_ptr.vmem [resolvable:$true] %s43
    %46 = dma.vmem_to_hbm [thread:$0]  %s44, 128, %s1, [#allocation1]
    %47 = dma.done [#allocation1], 128
    %48 = vsyncpa [#allocation1], 1

// kernel: retrieval_forward.1
$region0: #{retrieval_forward.1}
  #allocation0 [shape = 'u32[]', space=smem, size = 0x4, offset = 0x4, fixed_abs, tag = 'smem constant byte address 0x4 - core index']
  #allocation1 [shape = 'u32[144,128]{1,0:T(1,128)}', space=vmem, size = 0x12000, scoped, tag = 'internal scratch']
  %s0 = inlined_call_operand.hbm [shape: bf16[2,8,128], index: 0, kind: input, shape index: {}]
  %s1 = inlined_call_operand.hbm [shape: bf16[2,128,128], index: 1, kind: input, shape index: {}]
  %s2 = inlined_call_operand.hbm [shape: f32[2,1,128], index: 2, kind: input, shape index: {}]
  %s3 = inlined_call_operand.hbm [shape: bf16[2,128,64], index: 3, kind: input, shape index: {}]
  %s4 = inlined_call_operand.hbm [shape: f32[2,1,64], index: 4, kind: input, shape index: {}]
  %s5 = inlined_call_operand.hbm [shape: f32[2,1,64], index: 5, kind: input, shape index: {}]
  %s6 = inlined_call_operand.hbm [shape: f32[2,1,64], index: 6, kind: input, shape index: {}]
  %s7 = inlined_call_operand.hbm [shape: f32[64,64], index: 7, kind: input, shape index: {}]
  %s8 = inlined_call_operand.hbm [shape: bf16[64,80], index: 8, kind: input, shape index: {}]
  %s9 = inlined_call_operand.hbm [shape: f32[1,80], index: 9, kind: input, shape index: {}]
  %s10 = inlined_call_operand.hbm [shape: bf16[80,40], index: 10, kind: input, shape index: {}]
  %s11 = inlined_call_operand.hbm [shape: f32[1,40], index: 11, kind: input, shape index: {}]
  %s12 = inlined_call_operand.hbm [shape: bf16[40,48], index: 12, kind: input, shape index: {}]
  %s13 = inlined_call_operand.hbm [shape: f32[1,48], index: 13, kind: input, shape index: {}]
  %s14 = inlined_call_operand.hbm [shape: f32[1,48], index: 14, kind: input, shape index: {}]
  %s15 = inlined_call_operand.hbm [shape: bf16[48,48], index: 15, kind: input, shape index: {}]
  %s16 = inlined_call_operand.hbm [shape: f32[1,48], index: 16, kind: input, shape index: {}]
  %s17 = inlined_call_operand.hbm [shape: bf16[48,3], index: 17, kind: input, shape index: {}]
  %s18 = inlined_call_operand.hbm [shape: f32[1,3], index: 18, kind: input, shape index: {}]
  %s19 = inlined_call_operand.hbm [shape: f32[2,8,64], index: 19, kind: output, shape index: {0}]
  %s20 = inlined_call_operand.hbm [shape: f32[8,128], index: 20, kind: output, shape index: {1}]
  %21 = xla_tuple %s19, %s20
  %s22 = sld [smem:[#allocation0]]
  $region170: #{retrieval_forward.1} parent=0
    _
  %s24 = ssub.s32 1, %s22
  %s25 = scalar_select 0, %s24, %s22
  $region1: #{retrieval_forward.1} parent=0
    #allocation2 [shape = 'u8[4096]{0}', space=vmem, size = 0x1000, scoped, tag = 'input window, operand 0, single buffered']
    #allocation3 [shape = 's32[1]{0}', space=sflag, size = 0x4, scoped, tag = 'scoped memory for retrieval_forward.1']
    #allocation4 [shape = 's32[1]{0}', space=sflag, size = 0x4, scoped, tag = 'scoped memory for retrieval_forward.1']
    #allocation5 [shape = 'u8[65536]{0}', space=vmem, size = 0x10000, scoped, tag = 'input window, operand 1, single buffered']
    #allocation6 [shape = 's32[1]{0}', space=sflag, size = 0x4, scoped, tag = 'scoped memory for retrieval_forward.1']
    #allocation7 [shape = 'u8[1024]{0}', space=vmem, size = 0x400, scoped, tag = 'input window, operand 2, single buffered']
    #allocation8 [shape = 'u8[65536]{0}', space=vmem, size = 0x10000, scoped, tag = 'input window, operand 3, single buffered']
    #allocation9 [shape = 's32[1]{0}', space=sflag, size = 0x4, scoped, tag = 'scoped memory for retrieval_forward.1']
    #allocation10 [shape = 'u8[1024]{0}', space=vmem, size = 0x400, scoped, tag = 'input window, operand 4, single buffered']
    #allocation11 [shape = 'u8[1024]{0}', space=vmem, size = 0x400, scoped, tag = 'input window, operand 5, single buffered']
    #allocation12 [shape = 's32[1]{0}', space=sflag, size = 0x4, scoped, tag = 'scoped memory for retrieval_forward.1']
    #allocation13 [shape = 'u8[1024]{0}', space=vmem, size = 0x400, scoped, tag = 'input window, operand 6, single buffered']
    #allocation14 [shape = 'u8[32768]{0}', space=vmem, size = 0x8000, scoped, tag = 'input window, operand 7, single buffered']
    #allocation15 [shape = 's32[1]{0}', space=sflag, size = 0x4, scoped, tag = 'scoped memory for retrieval_forward.1']
    #allocation16 [shape = 'u8[16384]{0}', space=vmem, size = 0x4000, scoped, tag = 'input window, operand 8, single buffered']
    #allocation17 [shape = 'u8[512]{0}', space=vmem, size = 0x400, scoped, tag = 'input window, operand 9, single buffered']
    #allocation18 [shape = 's32[1]{0}', space=sflag, size = 0x4, scoped, tag = 'scoped memory for retrieval_forward.1']
    #allocation19 [shape = 'u8[20480]{0}', space=vmem, size = 0x5000, scoped, tag = 'input window, operand 10, single buffered']
    #allocation20 [shape = 'u8[512]{0}', space=vmem, size = 0x400, scoped, tag = 'input window, operand 11, single buffered']
    #allocation21 [shape = 's32[1]{0}', space=sflag, size = 0x4, scoped, tag = 'scoped memory for retrieval_forward.1']
    #allocation22 [shape = 'u8[10240]{0}', space=vmem, size = 0x2800, scoped, tag = 'input window, operand 12, single buffered']
    #allocation23 [shape = 'u8[512]{0}', space=vmem, size = 0x400, scoped, tag = 'input window, operand 13, single buffered']
    #allocation24 [shape = 's32[1]{0}', space=sflag, size = 0x4, scoped, tag = 'scoped memory for retrieval_forward.1']
    #allocation25 [shape = 'u8[512]{0}', space=vmem, size = 0x400, scoped, tag = 'input window, operand 14, single buffered']
    #allocation26 [shape = 'u8[12288]{0}', space=vmem, size = 0x3000, scoped, tag = 'input window, operand 15, single buffered']
    #allocation27 [shape = 's32[1]{0}', space=sflag, size = 0x4, scoped, tag = 'scoped memory for retrieval_forward.1']
    #allocation28 [shape = 'u8[512]{0}', space=vmem, size = 0x400, scoped, tag = 'input window, operand 16, single buffered']
    #allocation29 [shape = 'u8[12288]{0}', space=vmem, size = 0x3000, scoped, tag = 'input window, operand 17, single buffered']
    #allocation30 [shape = 's32[1]{0}', space=sflag, size = 0x4, scoped, tag = 'scoped memory for retrieval_forward.1']
    #allocation31 [shape = 'u8[512]{0}', space=vmem, size = 0x400, scoped, tag = 'input window, operand 18, single buffered']
    #allocation32 [shape = 'u8[8192]{0}', space=vmem, size = 0x2000, scoped, tag = 'output window, operand 0, single buffered']
    #allocation33 [shape = 'u8[4096]{0}', space=vmem, size = 0x1000, scoped, tag = 'output window, operand 1, single buffered']
    #allocation34 [shape = 's32[1]{0}', space=sflag, size = 0x4, scoped, tag = 'scoped memory for retrieval_forward.1']
    %26 = vsyncpa [#allocation3], 0
    %27 = vsyncpa [#allocation6], 0
    %28 = vsyncpa [#allocation9], 0
    %29 = vsyncpa [#allocation12], 0
    %30 = vsyncpa [#allocation15], 0
    %31 = vsyncpa [#allocation18], 0
    %32 = vsyncpa [#allocation21], 0
    %33 = vsyncpa [#allocation24], 0
    %34 = vsyncpa [#allocation27], 0
    %35 = vsyncpa [#allocation30], 0
    %36 = vsyncpa [#allocation4], 0
    %37 = vsyncpa [#allocation34], 0
    // Predicated region
    $region2: #{retrieval_forward.1} parent=1 // pred_check
      _
    $region3: #{retrieval_forward.1} parent=1 // pred_check_branch
      %39 = sbr.rel (0) target = $region5
    $region4: #{retrieval_forward.1} parent=1 // pred_region
      %s41 = ssub.s32 128, 128
      %42 = vsyncadd [#allocation3], %s41
      %s43 = sshll.u32 [#allocation2], 4
      %s44 = int_to_ptr.vmem [resolvable:$true] %s43
      %49 = dma.hbm_to_vmem [thread:$0]  %s0, 128, %s44, [#allocation3], 64, 64, 4
    $region5: #{retrieval_forward.1} parent=1 // pred_fallthru
      _
    // Predicated region
    $region6: #{retrieval_forward.1} parent=1 // pred_check
      _
    $region7: #{retrieval_forward.1} parent=1 // pred_check_branch
      %51 = sbr.rel (0) target = $region9
    $region8: #{retrieval_forward.1} parent=1 // pred_region
      %s53 = ssub.s32 2048, 2048
      %54 = vsyncadd [#allocation6], %s53
      %s55 = sshll.u32 [#allocation5], 4
      %s56 = int_to_ptr.vmem [resolvable:$true] %s55
      %61 = dma.hbm_to_vmem [thread:$0]  %s1, 2048, %s56, [#allocation6], 64, 64, 4
    $region9: #{retrieval_forward.1} parent=1 // pred_fallthru
      _
    // Predicated region
    $region10: #{retrieval_forward.1} parent=1 // pred_check
      _
    $region11: #{retrieval_forward.1} parent=1 // pred_check_branch
      %63 = sbr.rel (0) target = $region13
    $region12: #{retrieval_forward.1} parent=1 // pred_region
      %s65 = ssub.s32 32, 32
      %66 = vsyncadd [#allocation6], %s65
      %s67 = sshll.u32 [#allocation7], 4
      %s68 = int_to_ptr.vmem [resolvable:$true] %s67
      %73 = dma.hbm_to_vmem [thread:$0]  %s2, 32, %s68, [#allocation6], 16, 16, 1
    $region13: #{retrieval_forward.1} parent=1 // pred_fallthru
      _
    // Predicated region
    $region14: #{retrieval_forward.1} parent=1 // pred_check
      _
    $region15: #{retrieval_forward.1} parent=1 // pred_check_branch
      %75 = sbr.rel (0) target = $region17
    $region16: #{retrieval_forward.1} parent=1 // pred_region
      %s77 = ssub.s32 2048, 2048
      %78 = vsyncadd [#allocation9], %s77
      %s79 = sshll.u32 [#allocation8], 4
      %s80 = int_to_ptr.vmem [resolvable:$true] %s79
      %85 = dma.hbm_to_vmem [thread:$0]  %s3, 2048, %s80, [#allocation9], 64, 64, 4
    $region17: #{retrieval_forward.1} parent=1 // pred_fallthru
      _
    // Predicated region
    $region18: #{retrieval_forward.1} parent=1 // pred_check
      _
    $region19: #{retrieval_forward.1} parent=1 // pred_check_branch
      %87 = sbr.rel (0) target = $region21
    $region20: #{retrieval_forward.1} parent=1 // pred_region
      %s89 = ssub.s32 32, 32
      %90 = vsyncadd [#allocation9], %s89
      %s91 = sshll.u32 [#allocation10], 4
      %s92 = int_to_ptr.vmem [resolvable:$true] %s91
      %97 = dma.hbm_to_vmem [thread:$0]  %s4, 32, %s92, [#allocation9], 16, 16, 1
    $region21: #{retrieval_forward.1} parent=1 // pred_fallthru
      _
    // Predicated region
    $region22: #{retrieval_forward.1} parent=1 // pred_check
      _
    $region23: #{retrieval_forward.1} parent=1 // pred_check_branch
      %99 = sbr.rel (0) target = $region25
    $region24: #{retrieval_forward.1} parent=1 // pred_region
      %s101 = ssub.s32 32, 32
      %102 = vsyncadd [#allocation12], %s101
      %s103 = sshll.u32 [#allocation11], 4
      %s104 = int_to_ptr.vmem [resolvable:$true] %s103
      %109 = dma.hbm_to_vmem [thread:$0]  %s5, 32, %s104, [#allocation12], 16, 16, 1
    $region25: #{retrieval_forward.1} parent=1 // pred_fallthru
      _
    // Predicated region
    $region26: #{retrieval_forward.1} parent=1 // pred_check
      _
    $region27: #{retrieval_forward.1} parent=1 // pred_check_branch
      %111 = sbr.rel (0) target = $region29
    $region28: #{retrieval_forward.1} parent=1 // pred_region
      %s113 = ssub.s32 32, 32
      %114 = vsyncadd [#allocation12], %s113
      %s115 = sshll.u32 [#allocation13], 4
      %s116 = int_to_ptr.vmem [resolvable:$true] %s115
      %121 = dma.hbm_to_vmem [thread:$0]  %s6, 32, %s116, [#allocation12], 16, 16, 1
    $region29: #{retrieval_forward.1} parent=1 // pred_fallthru
      _
    // Predicated region
    $region30: #{retrieval_forward.1} parent=1 // pred_check
      _
    $region31: #{retrieval_forward.1} parent=1 // pred_check_branch
      %123 = sbr.rel (0) target = $region33
    $region32: #{retrieval_forward.1} parent=1 // pred_region
      %s125 = ssub.s32 1024, 1024
      %126 = vsyncadd [#allocation15], %s125
      %s127 = sshll.u32 [#allocation14], 4
      %s128 = int_to_ptr.vmem [resolvable:$true] %s127
      %133 = dma.hbm_to_vmem [thread:$0]  %s7, 1024, %s128, [#allocation15], 128, 128, 8
    $region33: #{retrieval_forward.1} parent=1 // pred_fallthru
      _
    // Predicated region
    $region34: #{retrieval_forward.1} parent=1 // pred_check
      _
    $region35: #{retrieval_forward.1} parent=1 // pred_check_branch
      %135 = sbr.rel (0) target = $region37
    $region36: #{retrieval_forward.1} parent=1 // pred_region
      %s137 = ssub.s32 512, 512
      %138 = vsyncadd [#allocation15], %s137
      %s139 = sshll.u32 [#allocation16], 4
      %s140 = int_to_ptr.vmem [resolvable:$true] %s139
      %145 = dma.hbm_to_vmem [thread:$0]  %s8, 512, %s140, [#allocation15], 64, 64, 4
    $region37: #{retrieval_forward.1} parent=1 // pred_fallthru
      _
    // Predicated region
    $region38: #{retrieval_forward.1} parent=1 // pred_check
      _
    $region39: #{retrieval_forward.1} parent=1 // pred_check_branch
      %147 = sbr.rel (0) target = $region41
    $region40: #{retrieval_forward.1} parent=1 // pred_region
      %s149 = ssub.s32 16, 16
      %150 = vsyncadd [#allocation18], %s149
      %s152 = sshll.u32 [#allocation17], 4
      %s153 = int_to_ptr.vmem [resolvable:$true] %s152
      %155 = dma.hbm_to_vmem [thread:$0]  %s9, 16, %s153, [#allocation18]
    $region41: #{retrieval_forward.1} parent=1 // pred_fallthru
      _
    // Predicated region
    $region42: #{retrieval_forward.1} parent=1 // pred_check
      _
    $region43: #{retrieval_forward.1} parent=1 // pred_check_branch
      %157 = sbr.rel (0) target = $region45
    $region44: #{retrieval_forward.1} parent=1 // pred_region
      %s159 = ssub.s32 640, 640
      %160 = vsyncadd [#allocation18], %s159
      %s161 = sshll.u32 [#allocation19], 4
      %s162 = int_to_ptr.vmem [resolvable:$true] %s161
      %167 = dma.hbm_to_vmem [thread:$0]  %s10, 640, %s162, [#allocation18], 64, 64, 4
    $region45: #{retrieval_forward.1} parent=1 // pred_fallthru
      _
    // Predicated region
    $region46: #{retrieval_forward.1} parent=1 // pred_check
      _
    $region47: #{retrieval_forward.1} parent=1 // pred_check_branch
      %169 = sbr.rel (0) target = $region49
    $region48: #{retrieval_forward.1} parent=1 // pred_region
      %s171 = ssub.s32 16, 16
      %172 = vsyncadd [#allocation21], %s171
      %s174 = sshll.u32 [#allocation20], 4
      %s175 = int_to_ptr.vmem [resolvable:$true] %s174
      %177 = dma.hbm_to_vmem [thread:$0]  %s11, 16, %s175, [#allocation21]
    $region49: #{retrieval_forward.1} parent=1 // pred_fallthru
      _
    // Predicated region
    $region50: #{retrieval_forward.1} parent=1 // pred_check
      _
    $region51: #{retrieval_forward.1} parent=1 // pred_check_branch
      %179 = sbr.rel (0) target = $region53
    $region52: #{retrieval_forward.1} parent=1 // pred_region
      %s181 = ssub.s32 320, 320
      %182 = vsyncadd [#allocation21], %s181
      %s183 = sshll.u32 [#allocation22], 4
      %s184 = int_to_ptr.vmem [resolvable:$true] %s183
      %189 = dma.hbm_to_vmem [thread:$0]  %s12, 320, %s184, [#allocation21], 64, 64, 4
    $region53: #{retrieval_forward.1} parent=1 // pred_fallthru
      _
    // Predicated region
    $region54: #{retrieval_forward.1} parent=1 // pred_check
      _
    $region55: #{retrieval_forward.1} parent=1 // pred_check_branch
      %191 = sbr.rel (0) target = $region57
    $region56: #{retrieval_forward.1} parent=1 // pred_region
      %s193 = ssub.s32 16, 16
      %194 = vsyncadd [#allocation24], %s193
      %s196 = sshll.u32 [#allocation23], 4
      %s197 = int_to_ptr.vmem [resolvable:$true] %s196
      %199 = dma.hbm_to_vmem [thread:$0]  %s13, 16, %s197, [#allocation24]
    $region57: #{retrieval_forward.1} parent=1 // pred_fallthru
      _
    // Predicated region
    $region58: #{retrieval_forward.1} parent=1 // pred_check
      _
    $region59: #{retrieval_forward.1} parent=1 // pred_check_branch
      %201 = sbr.rel (0) target = $region61
    $region60: #{retrieval_forward.1} parent=1 // pred_region
      %s203 = ssub.s32 16, 16
      %204 = vsyncadd [#allocation24], %s203
      %s206 = sshll.u32 [#allocation25], 4
      %s207 = int_to_ptr.vmem [resolvable:$true] %s206
      %209 = dma.hbm_to_vmem [thread:$0]  %s14, 16, %s207, [#allocation24]
    $region61: #{retrieval_forward.1} parent=1 // pred_fallthru
      _
    // Predicated region
    $region62: #{retrieval_forward.1} parent=1 // pred_check
      _
    $region63: #{retrieval_forward.1} parent=1 // pred_check_branch
      %211 = sbr.rel (0) target = $region65
    $region64: #{retrieval_forward.1} parent=1 // pred_region
      %s213 = ssub.s32 384, 384
      %214 = vsyncadd [#allocation27], %s213
      %s215 = sshll.u32 [#allocation26], 4
      %s216 = int_to_ptr.vmem [resolvable:$true] %s215
      %221 = dma.hbm_to_vmem [thread:$0]  %s15, 384, %s216, [#allocation27], 64, 64, 4
    $region65: #{retrieval_forward.1} parent=1 // pred_fallthru
      _
    // Predicated region
    $region66: #{retrieval_forward.1} parent=1 // pred_check
      _
    $region67: #{retrieval_forward.1} parent=1 // pred_check_branch
      %223 = sbr.rel (0) target = $region69
    $region68: #{retrieval_forward.1} parent=1 // pred_region
      %s225 = ssub.s32 16, 16
      %226 = vsyncadd [#allocation27], %s225
      %s228 = sshll.u32 [#allocation28], 4
      %s229 = int_to_ptr.vmem [resolvable:$true] %s228
      %231 = dma.hbm_to_vmem [thread:$0]  %s16, 16, %s229, [#allocation27]
    $region69: #{retrieval_forward.1} parent=1 // pred_fallthru
      _
    // Predicated region
    $region70: #{retrieval_forward.1} parent=1 // pred_check
      _
    $region71: #{retrieval_forward.1} parent=1 // pred_check_branch
      %233 = sbr.rel (0) target = $region73
    $region72: #{retrieval_forward.1} parent=1 // pred_region
      %s235 = ssub.s32 384, 384
      %236 = vsyncadd [#allocation30], %s235
      %s237 = sshll.u32 [#allocation29], 4
      %s238 = int_to_ptr.vmem [resolvable:$true] %s237
      %243 = dma.hbm_to_vmem [thread:$0]  %s17, 384, %s238, [#allocation30], 64, 64, 4
    $region73: #{retrieval_forward.1} parent=1 // pred_fallthru
      _
    // Predicated region
    $region74: #{retrieval_forward.1} parent=1 // pred_check
      _
    $region75: #{retrieval_forward.1} parent=1 // pred_check_branch
      %245 = sbr.rel (0) target = $region77
    $region76: #{retrieval_forward.1} parent=1 // pred_region
      %s247 = ssub.s32 16, 16
      %248 = vsyncadd [#allocation30], %s247
      %s250 = sshll.u32 [#allocation31], 4
      %s251 = int_to_ptr.vmem [resolvable:$true] %s250
      %253 = dma.hbm_to_vmem [thread:$0]  %s18, 16, %s251, [#allocation30]
    $region77: #{retrieval_forward.1} parent=1 // pred_fallthru
      _
    // Predicated region
    $region78: #{retrieval_forward.1} parent=1 // pred_check
      _
    $region79: #{retrieval_forward.1} parent=1 // pred_check_branch
      %255 = sbr.rel (0) target = $region81
    $region80: #{retrieval_forward.1} parent=1 // pred_region
      %256 = dma.done [#allocation3], 128
    $region81: #{retrieval_forward.1} parent=1 // pred_fallthru
      _
    // Predicated region
    $region82: #{retrieval_forward.1} parent=1 // pred_check
      _
    $region83: #{retrieval_forward.1} parent=1 // pred_check_branch
      %258 = sbr.rel (0) target = $region85
    $region84: #{retrieval_forward.1} parent=1 // pred_region
      %259 = dma.done [#allocation6], 2048
    $region85: #{retrieval_forward.1} parent=1 // pred_fallthru
      _
    // Predicated region
    $region86: #{retrieval_forward.1} parent=1 // pred_check
      _
    $region87: #{retrieval_forward.1} parent=1 // pred_check_branch
      %261 = sbr.rel (0) target = $region89
    $region88: #{retrieval_forward.1} parent=1 // pred_region
      %262 = dma.done [#allocation6], 32
    $region89: #{retrieval_forward.1} parent=1 // pred_fallthru
      _
    // Predicated region
    $region90: #{retrieval_forward.1} parent=1 // pred_check
      _
    $region91: #{retrieval_forward.1} parent=1 // pred_check_branch
      %264 = sbr.rel (0) target = $region93
    $region92: #{retrieval_forward.1} parent=1 // pred_region
      %265 = dma.done [#allocation9], 2048
    $region93: #{retrieval_forward.1} parent=1 // pred_fallthru
      _
    // Predicated region
    $region94: #{retrieval_forward.1} parent=1 // pred_check
      _
    $region95: #{retrieval_forward.1} parent=1 // pred_check_branch
      %267 = sbr.rel (0) target = $region97
    $region96: #{retrieval_forward.1} parent=1 // pred_region
      %268 = dma.done [#allocation9], 32
    $region97: #{retrieval_forward.1} parent=1 // pred_fallthru
      _
    // Predicated region
    $region98: #{retrieval_forward.1} parent=1 // pred_check
      _
    $region99: #{retrieval_forward.1} parent=1 // pred_check_branch
      %270 = sbr.rel (0) target = $region101
    $region100: #{retrieval_forward.1} parent=1 // pred_region
      %271 = dma.done [#allocation12], 32
    $region101: #{retrieval_forward.1} parent=1 // pred_fallthru
      _
    // Predicated region
    $region102: #{retrieval_forward.1} parent=1 // pred_check
      _
    $region103: #{retrieval_forward.1} parent=1 // pred_check_branch
      %273 = sbr.rel (0) target = $region105
    $region104: #{retrieval_forward.1} parent=1 // pred_region
      %274 = dma.done [#allocation12], 32
    $region105: #{retrieval_forward.1} parent=1 // pred_fallthru
      _
    // Predicated region
    $region106: #{retrieval_forward.1} parent=1 // pred_check
      _
    $region107: #{retrieval_forward.1} parent=1 // pred_check_branch
      %276 = sbr.rel (0) target = $region109
    $region108: #{retrieval_forward.1} parent=1 // pred_region
      %277 = dma.done [#allocation15], 1024
    $region109: #{retrieval_forward.1} parent=1 // pred_fallthru
      _
    // Predicated region
    $region110: #{retrieval_forward.1} parent=1 // pred_check
      _
    $region111: #{retrieval_forward.1} parent=1 // pred_check_branch
      %279 = sbr.rel (0) target = $region113
    $region112: #{retrieval_forward.1} parent=1 // pred_region
      %280 = dma.done [#allocation15], 512
    $region113: #{retrieval_forward.1} parent=1 // pred_fallthru
      _
    // Predicated region
    $region114: #{retrieval_forward.1} parent=1 // pred_check
      _
    $region115: #{retrieval_forward.1} parent=1 // pred_check_branch
      %282 = sbr.rel (0) target = $region117
    $region116: #{retrieval_forward.1} parent=1 // pred_region
      %283 = dma.done [#allocation18], 16
    $region117: #{retrieval_forward.1} parent=1 // pred_fallthru
      _
    // Predicated region
    $region118: #{retrieval_forward.1} parent=1 // pred_check
      _
    $region119: #{retrieval_forward.1} parent=1 // pred_check_branch
      %285 = sbr.rel (0) target = $region121
    $region120: #{retrieval_forward.1} parent=1 // pred_region
      %286 = dma.done [#allocation18], 640
    $region121: #{retrieval_forward.1} parent=1 // pred_fallthru
      _
    // Predicated region
    $region122: #{retrieval_forward.1} parent=1 // pred_check
      _
    $region123: #{retrieval_forward.1} parent=1 // pred_check_branch
      %288 = sbr.rel (0) target = $region125
    $region124: #{retrieval_forward.1} parent=1 // pred_region
      %289 = dma.done [#allocation21], 16
    $region125: #{retrieval_forward.1} parent=1 // pred_fallthru
      _
    // Predicated region
    $region126: #{retrieval_forward.1} parent=1 // pred_check
      _
    $region127: #{retrieval_forward.1} parent=1 // pred_check_branch
      %291 = sbr.rel (0) target = $region129
    $region128: #{retrieval_forward.1} parent=1 // pred_region
      %292 = dma.done [#allocation21], 320
    $region129: #{retrieval_forward.1} parent=1 // pred_fallthru
      _
    // Predicated region
    $region130: #{retrieval_forward.1} parent=1 // pred_check
      _
    $region131: #{retrieval_forward.1} parent=1 // pred_check_branch
      %294 = sbr.rel (0) target = $region133
    $region132: #{retrieval_forward.1} parent=1 // pred_region
      %295 = dma.done [#allocation24], 16
    $region133: #{retrieval_forward.1} parent=1 // pred_fallthru
      _
    // Predicated region
    $region134: #{retrieval_forward.1} parent=1 // pred_check
      _
    $region135: #{retrieval_forward.1} parent=1 // pred_check_branch
      %297 = sbr.rel (0) target = $region137
    $region136: #{retrieval_forward.1} parent=1 // pred_region
      %298 = dma.done [#allocation24], 16
    $region137: #{retrieval_forward.1} parent=1 // pred_fallthru
      _
    // Predicated region
    $region138: #{retrieval_forward.1} parent=1 // pred_check
      _
    $region139: #{retrieval_forward.1} parent=1 // pred_check_branch
      %300 = sbr.rel (0) target = $region141
    $region140: #{retrieval_forward.1} parent=1 // pred_region
      %301 = dma.done [#allocation27], 384
    $region141: #{retrieval_forward.1} parent=1 // pred_fallthru
      _
    // Predicated region
    $region142: #{retrieval_forward.1} parent=1 // pred_check
      _
    $region143: #{retrieval_forward.1} parent=1 // pred_check_branch
      %303 = sbr.rel (0) target = $region145
    $region144: #{retrieval_forward.1} parent=1 // pred_region
      %304 = dma.done [#allocation27], 16
    $region145: #{retrieval_forward.1} parent=1 // pred_fallthru
      _
    // Predicated region
    $region146: #{retrieval_forward.1} parent=1 // pred_check
      _
    $region147: #{retrieval_forward.1} parent=1 // pred_check_branch
      %306 = sbr.rel (0) target = $region149
    $region148: #{retrieval_forward.1} parent=1 // pred_region
      %307 = dma.done [#allocation30], 384
    $region149: #{retrieval_forward.1} parent=1 // pred_fallthru
      _
    // Predicated region
    $region150: #{retrieval_forward.1} parent=1 // pred_check
      _
    $region151: #{retrieval_forward.1} parent=1 // pred_check_branch
      %309 = sbr.rel (0) target = $region153
    $region152: #{retrieval_forward.1} parent=1 // pred_region
      %310 = dma.done [#allocation30], 16
    $region153: #{retrieval_forward.1} parent=1 // pred_fallthru
      _
    %v312 = vld [vmem:[#allocation14] sm:$0xff]
    %v313 = vld [vmem:[#allocation14 + $0x8] sm:$0xff]
    %v314 = vld [vmem:[#allocation14 + $0x10] sm:$0xff]
    %v315 = vld [vmem:[#allocation14 + $0x18] sm:$0xff]
    %v316 = vld [vmem:[#allocation14 + $0x20] sm:$0xff]
    %v317 = vld [vmem:[#allocation14 + $0x28] sm:$0xff]
    %v318 = vld [vmem:[#allocation14 + $0x30] sm:$0xff]
    %v319 = vld [vmem:[#allocation14 + $0x38] sm:$0xff]
    %v320 = vld [vmem:[#allocation2] sm:$0xf]
    %v321 = vld [vmem:[#allocation5] sm:$0xf]
    %v322 = vld [vmem:[#allocation5 + $0x4] sm:$0xf]
    %v323 = vld [vmem:[#allocation5 + $0x8] sm:$0xf]
    %v324 = vld [vmem:[#allocation5 + $0xc] sm:$0xf]
    %v325 = vld [vmem:[#allocation5 + $0x10] sm:$0xf]
    %v326 = vld [vmem:[#allocation5 + $0x14] sm:$0xf]
    %v327 = vld [vmem:[#allocation5 + $0x18] sm:$0xf]
    %v328 = vld [vmem:[#allocation5 + $0x1c] sm:$0xf]
    %v329 = vld [vmem:[#allocation5 + $0x20] sm:$0xf]
    %v330 = vld [vmem:[#allocation5 + $0x24] sm:$0xf]
    %v331 = vld [vmem:[#allocation5 + $0x28] sm:$0xf]
    %v332 = vld [vmem:[#allocation5 + $0x2c] sm:$0xf]
    %v333 = vld [vmem:[#allocation5 + $0x30] sm:$0xf]
    %v334 = vld [vmem:[#allocation5 + $0x34] sm:$0xf]
    %v335 = vld [vmem:[#allocation5 + $0x38] sm:$0xf]
    %v336 = vld [vmem:[#allocation5 + $0x3c] sm:$0xf]
    %v337 = vld [vmem:[#allocation7] sm:$0x1]
    %v339 = vlaneseq
    %v340 = vshrl.u32 %v339, 7
    %v341 = vsub.s32 0, %v340
    %v342 = vrot.slane %v337, %v341
    %v360 = vunpack.c.l.b16 %v321
    %v361 = vunpack.c.l.b16 %v322
    %v362 = vunpack.c.l.b16 %v323
    %v363 = vunpack.c.l.b16 %v324
    %v364 = vunpack.c.l.b16 %v325
    %v365 = vunpack.c.l.b16 %v326
    %v366 = vunpack.c.l.b16 %v327
    %v367 = vunpack.c.l.b16 %v328
    %v368 = vunpack.c.l.b16 %v329
    %v369 = vunpack.c.l.b16 %v330
    %v370 = vunpack.c.l.b16 %v331
    %v371 = vunpack.c.l.b16 %v332
    %v372 = vunpack.c.l.b16 %v333
    %v373 = vunpack.c.l.b16 %v334
    %v374 = vunpack.c.l.b16 %v335
    %v375 = vunpack.c.l.b16 %v336
    %v376 = vpack.c.b16 %v361, %v360
    %v377 = vpack.c.b16 %v363, %v362
    %v378 = vpack.c.b16 %v365, %v364
    %v379 = vpack.c.b16 %v367, %v366
    %v380 = vpack.c.b16 %v369, %v368
    %v381 = vpack.c.b16 %v371, %v370
    %v382 = vpack.c.b16 %v373, %v372
    %v383 = vpack.c.b16 %v375, %v374
    %392 = vmatprep.subr.bf16.mxu0 0
    %393 = vmatpush1.bf16.msra.mxu0 %v376
    %394 = vmatprep.subr.bf16.mxu0 0
    %395 = vmatpush1.bf16.msra.mxu0 %v377
    %396 = vmatprep.subr.bf16.mxu0 0
    %397 = vmatpush1.bf16.msra.mxu0 %v378
    %398 = vmatprep.subr.bf16.mxu0 0
    %399 = vmatpush1.bf16.msra.mxu0 %v379
    %400 = vmatprep.subr.bf16.mxu0 0
    %401 = vmatpush1.bf16.msra.mxu0 %v380
    %402 = vmatprep.subr.bf16.mxu0 0
    %403 = vmatpush1.bf16.msra.mxu0 %v381
    %404 = vmatprep.subr.bf16.mxu0 0
    %405 = vmatpush1.bf16.msra.mxu0 %v382
    %406 = vmatprep.subr.bf16.mxu0 0
    %407 = vmatpush1.bf16.msra.mxu0 %v383
    %408 = vmatprep.subr.bf16.mxu0 0
    %409 = vmatpush1.bf16.msra.mxu0 0
    %410 = vmatprep.subr.bf16.mxu0 0
    %411 = vmatpush1.bf16.msra.mxu0 0
    %412 = vmatprep.subr.bf16.mxu0 0
    %413 = vmatpush1.bf16.msra.mxu0 0
    %414 = vmatprep.subr.bf16.mxu0 0
    %415 = vmatpush1.bf16.msra.mxu0 0
    %416 = vmatprep.subr.bf16.mxu0 0
    %417 = vmatpush1.bf16.msra.mxu0 0
    %418 = vmatprep.subr.bf16.mxu0 0
    %419 = vmatpush1.bf16.msra.mxu0 0
    %420 = vmatprep.subr.bf16.mxu0 0
    %421 = vmatpush1.bf16.msra.mxu0 0
    %422 = vmatprep.subr.bf16.mxu0 0
    %423 = vmatpush1.bf16.msra.mxu0 0
    %424 = vmatprep.mubr.bf16.mxu0 0
    %425 = vmatmul.mubr.bf16.gmra.mrb[0].mxu0 %v320
    %v426 = vpop.f32.mrb[0].mxu0
    %v427 = vadd.f32 %v342, %v426
    %v428 = vpop.f32.mrb[0].mxu0
    %v429 = vpop.f32.mrb[0].mxu0
    %v430 = vpop.f32.mrb[0].mxu0
    %431 = vdwg.mxu0
    %v432 = vmax.f32 %v427, 0.0
    %v433 = vpack.c.bf16 %v432, %v432
    %v434 = vld [vmem:[#allocation8] sm:$0xf]
    %v435 = vld [vmem:[#allocation8 + $0x4] sm:$0xf]
    %v436 = vld [vmem:[#allocation8 + $0x8] sm:$0xf]
    %v437 = vld [vmem:[#allocation8 + $0xc] sm:$0xf]
    %v438 = vld [vmem:[#allocation8 + $0x10] sm:$0xf]
    %v439 = vld [vmem:[#allocation8 + $0x14] sm:$0xf]
    %v440 = vld [vmem:[#allocation8 + $0x18] sm:$0xf]
    %v441 = vld [vmem:[#allocation8 + $0x1c] sm:$0xf]
    %v442 = vld [vmem:[#allocation8 + $0x20] sm:$0xf]
    %v443 = vld [vmem:[#allocation8 + $0x24] sm:$0xf]
    %v444 = vld [vmem:[#allocation8 + $0x28] sm:$0xf]
    %v445 = vld [vmem:[#allocation8 + $0x2c] sm:$0xf]
    %v446 = vld [vmem:[#allocation8 + $0x30] sm:$0xf]
    %v447 = vld [vmem:[#allocation8 + $0x34] sm:$0xf]
    %v448 = vld [vmem:[#allocation8 + $0x38] sm:$0xf]
    %v449 = vld [vmem:[#allocation8 + $0x3c] sm:$0xf]
    %v450 = vld [vmem:[#allocation10] sm:$0x1]
    %v452 = vlaneseq
    %v453 = vshrl.u32 %v452, 7
    %v454 = vsub.s32 0, %v453
    %v455 = vrot.slane %v450, %v454
    %v473 = vunpack.c.l.b16 %v434
    %v474 = vunpack.c.l.b16 %v435
    %v475 = vunpack.c.l.b16 %v436
    %v476 = vunpack.c.l.b16 %v437
    %v477 = vunpack.c.l.b16 %v438
    %v478 = vunpack.c.l.b16 %v439
    %v479 = vunpack.c.l.b16 %v440
    %v480 = vunpack.c.l.b16 %v441
    %v481 = vunpack.c.l.b16 %v442
    %v482 = vunpack.c.l.b16 %v443
    %v483 = vunpack.c.l.b16 %v444
    %v484 = vunpack.c.l.b16 %v445
    %v485 = vunpack.c.l.b16 %v446
    %v486 = vunpack.c.l.b16 %v447
    %v487 = vunpack.c.l.b16 %v448
    %v488 = vunpack.c.l.b16 %v449
    %v489 = vpack.c.b16 %v474, %v473
    %v490 = vpack.c.b16 %v476, %v475
    %v491 = vpack.c.b16 %v478, %v477
    %v492 = vpack.c.b16 %v480, %v479
    %v493 = vpack.c.b16 %v482, %v481
    %v494 = vpack.c.b16 %v484, %v483
    %v495 = vpack.c.b16 %v486, %v485
    %v496 = vpack.c.b16 %v488, %v487
    %505 = vmatprep.subr.bf16.mxu0 0
    %506 = vmatpush1.bf16.msra.mxu0 %v489
    %507 = vmatprep.subr.bf16.mxu0 0
    %508 = vmatpush1.bf16.msra.mxu0 %v490
    %509 = vmatprep.subr.bf16.mxu0 0
    %510 = vmatpush1.bf16.msra.mxu0 %v491
    %511 = vmatprep.subr.bf16.mxu0 0
    %512 = vmatpush1.bf16.msra.mxu0 %v492
    %513 = vmatprep.subr.bf16.mxu0 0
    %514 = vmatpush1.bf16.msra.mxu0 %v493
    %515 = vmatprep.subr.bf16.mxu0 0
    %516 = vmatpush1.bf16.msra.mxu0 %v494
    %517 = vmatprep.subr.bf16.mxu0 0
    %518 = vmatpush1.bf16.msra.mxu0 %v495
    %519 = vmatprep.subr.bf16.mxu0 0
    %520 = vmatpush1.bf16.msra.mxu0 %v496
    %521 = vmatprep.subr.bf16.mxu0 0
    %522 = vmatpush1.bf16.msra.mxu0 0
    %523 = vmatprep.subr.bf16.mxu0 0
    %524 = vmatpush1.bf16.msra.mxu0 0
    %525 = vmatprep.subr.bf16.mxu0 0
    %526 = vmatpush1.bf16.msra.mxu0 0
    %527 = vmatprep.subr.bf16.mxu0 0
    %528 = vmatpush1.bf16.msra.mxu0 0
    %529 = vmatprep.subr.bf16.mxu0 0
    %530 = vmatpush1.bf16.msra.mxu0 0
    %531 = vmatprep.subr.bf16.mxu0 0
    %532 = vmatpush1.bf16.msra.mxu0 0
    %533 = vmatprep.subr.bf16.mxu0 0
    %534 = vmatpush1.bf16.msra.mxu0 0
    %535 = vmatprep.subr.bf16.mxu0 0
    %536 = vmatpush1.bf16.msra.mxu0 0
    %537 = vmatprep.mubr.bf16.mxu0 0
    %538 = vmatmul.mubr.bf16.gmra.mrb[0].mxu0 %v433
    %v539 = vpop.f32.mrb[0].mxu0
    %v540 = vadd.f32 %v455, %v539
    %v541 = vpop.f32.mrb[0].mxu0
    %v542 = vpop.f32.mrb[0].mxu0
    %v543 = vpop.f32.mrb[0].mxu0
    %544 = vdwg.mxu0
    %vm545 = vcmask 523264
    %v547 = vsel %vm545, %v540, 0
    %549 = vmatprep.subr.mxu0 0.0
    %550 = vmatpush1.msra.mxu0 %v312
    %551 = vmatprep.subr.mxu0 0.0
    %552 = vmatpush1.msra.mxu0 %v313
    %553 = vmatprep.subr.mxu0 0.0
    %554 = vmatpush1.msra.mxu0 %v314
    %555 = vmatprep.subr.mxu0 0.0
    %556 = vmatpush1.msra.mxu0 %v315
    %557 = vmatprep.subr.mxu0 0.0
    %558 = vmatpush1.msra.mxu0 %v316
    %559 = vmatprep.subr.mxu0 0.0
    %560 = vmatpush1.msra.mxu0 %v317
    %561 = vmatprep.subr.mxu0 0.0
    %562 = vmatpush1.msra.mxu0 %v318
    %563 = vmatprep.subr.mxu0 0.0
    %564 = vmatpush1.msra.mxu0 %v319
    %565 = vmatprep.subr.mxu0 0.0
    %566 = vmatpush1.msra.mxu0 0.0
    %567 = vmatprep.subr.mxu0 0.0
    %568 = vmatpush1.msra.mxu0 0.0
    %569 = vmatprep.subr.mxu0 0.0
    %570 = vmatpush1.msra.mxu0 0.0
    %571 = vmatprep.subr.mxu0 0.0
    %572 = vmatpush1.msra.mxu0 0.0
    %573 = vmatprep.subr.mxu0 0.0
    %574 = vmatpush1.msra.mxu0 0.0
    %575 = vmatprep.subr.mxu0 0.0
    %576 = vmatpush1.msra.mxu0 0.0
    %577 = vmatprep.subr.mxu0 0.0
    %578 = vmatpush1.msra.mxu0 0.0
    %579 = vmatprep.subr.mxu0 0.0
    %580 = vmatpush1.msra.mxu0 0.0
    %581 = vmatprep.subr.mxu0 0.0
    %582 = vmatpush1.msra.mxu0 0.0
    %583 = vmatprep.subr.mxu0 0.0
    %584 = vmatpush1.msra.mxu0 0.0
    %585 = vmatprep.subr.mxu0 0.0
    %586 = vmatpush1.msra.mxu0 0.0
    %587 = vmatprep.subr.mxu0 0.0
    %588 = vmatpush1.msra.mxu0 0.0
    %589 = vmatprep.subr.mxu0 0.0
    %590 = vmatpush1.msra.mxu0 0.0
    %591 = vmatprep.subr.mxu0 0.0
    %592 = vmatpush1.msra.mxu0 0.0
    %593 = vmatprep.subr.mxu0 0.0
    %594 = vmatpush1.msra.mxu0 0.0
    %595 = vmatprep.subr.mxu0 0.0
    %596 = vmatpush1.msra.mxu0 0.0
    %597 = vmatprep.subr.mxu0 0.0
    %598 = vmatpush1.msra.mxu0 0.0
    %599 = vmatprep.subr.mxu0 0.0
    %600 = vmatpush1.msra.mxu0 0.0
    %601 = vmatprep.subr.mxu0 0.0
    %602 = vmatpush1.msra.mxu0 0.0
    %603 = vmatprep.subr.mxu0 0.0
    %604 = vmatpush1.msra.mxu0 0.0
    %605 = vmatprep.subr.mxu0 0.0
    %606 = vmatpush1.msra.mxu0 0.0
    %607 = vmatprep.subr.mxu0 0.0
    %608 = vmatpush1.msra.mxu0 0.0
    %609 = vmatprep.subr.mxu0 0.0
    %610 = vmatpush1.msra.mxu0 0.0
    %611 = vmatprep.subr.mxu0 0.0
    %612 = vmatpush1.msra.mxu0 0.0
    %613 = vmatprep.mubr.f32.mxu0 0.0
    %614 = vmatmul.mubr.f32.gmra.mrb[0].mxu0 %v547
    %v615 = vpop.f32.mrb[0].mxu0
    %v616 = vadd.f32 0.0, %v615
    %v617 = vpop.f32.mrb[0].mxu0
    %618 = vdwg.mxu0
    %v619 = vsub.f32 %v540, %v616
    %v620 = vmul.f32 %v619, %v619
    %v622 = vsel %vm545, %v620, 0
    %624 = vmatprep.subr.mxu0 0.0
    %625 = vmatpush1.msra.mxu0 %v312
    %626 = vmatprep.subr.mxu0 0.0
    %627 = vmatpush1.msra.mxu0 %v313
    %628 = vmatprep.subr.mxu0 0.0
    %629 = vmatpush1.msra.mxu0 %v314
    %630 = vmatprep.subr.mxu0 0.0
    %631 = vmatpush1.msra.mxu0 %v315
    %632 = vmatprep.subr.mxu0 0.0
    %633 = vmatpush1.msra.mxu0 %v316
    %634 = vmatprep.subr.mxu0 0.0
    %635 = vmatpush1.msra.mxu0 %v317
    %636 = vmatprep.subr.mxu0 0.0
    %637 = vmatpush1.msra.mxu0 %v318
    %638 = vmatprep.subr.mxu0 0.0
    %639 = vmatpush1.msra.mxu0 %v319
    %640 = vmatprep.subr.mxu0 0.0
    %641 = vmatpush1.msra.mxu0 0.0
    %642 = vmatprep.subr.mxu0 0.0
    %643 = vmatpush1.msra.mxu0 0.0
    %644 = vmatprep.subr.mxu0 0.0
    %645 = vmatpush1.msra.mxu0 0.0
    %646 = vmatprep.subr.mxu0 0.0
    %647 = vmatpush1.msra.mxu0 0.0
    %648 = vmatprep.subr.mxu0 0.0
    %649 = vmatpush1.msra.mxu0 0.0
    %650 = vmatprep.subr.mxu0 0.0
    %651 = vmatpush1.msra.mxu0 0.0
    %652 = vmatprep.subr.mxu0 0.0
    %653 = vmatpush1.msra.mxu0 0.0
    %654 = vmatprep.subr.mxu0 0.0
    %655 = vmatpush1.msra.mxu0 0.0
    %656 = vmatprep.subr.mxu0 0.0
    %657 = vmatpush1.msra.mxu0 0.0
    %658 = vmatprep.subr.mxu0 0.0
    %659 = vmatpush1.msra.mxu0 0.0
    %660 = vmatprep.subr.mxu0 0.0
    %661 = vmatpush1.msra.mxu0 0.0
    %662 = vmatprep.subr.mxu0 0.0
    %663 = vmatpush1.msra.mxu0 0.0
    %664 = vmatprep.subr.mxu0 0.0
    %665 = vmatpush1.msra.mxu0 0.0
    %666 = vmatprep.subr.mxu0 0.0
    %667 = vmatpush1.msra.mxu0 0.0
    %668 = vmatprep.subr.mxu0 0.0
    %669 = vmatpush1.msra.mxu0 0.0
    %670 = vmatprep.subr.mxu0 0.0
    %671 = vmatpush1.msra.mxu0 0.0
    %672 = vmatprep.subr.mxu0 0.0
    %673 = vmatpush1.msra.mxu0 0.0
    %674 = vmatprep.subr.mxu0 0.0
    %675 = vmatpush1.msra.mxu0 0.0
    %676 = vmatprep.subr.mxu0 0.0
    %677 = vmatpush1.msra.mxu0 0.0
    %678 = vmatprep.subr.mxu0 0.0
    %679 = vmatpush1.msra.mxu0 0.0
    %680 = vmatprep.subr.mxu0 0.0
    %681 = vmatpush1.msra.mxu0 0.0
    %682 = vmatprep.subr.mxu0 0.0
    %683 = vmatpush1.msra.mxu0 0.0
    %684 = vmatprep.subr.mxu0 0.0
    %685 = vmatpush1.msra.mxu0 0.0
    %686 = vmatprep.subr.mxu0 0.0
    %687 = vmatpush1.msra.mxu0 0.0
    %688 = vmatprep.mubr.f32.mxu0 0.0
    %689 = vmatmul.mubr.f32.gmra.mrb[0].mxu0 %v622
    %v690 = vpop.f32.mrb[0].mxu0
    %v691 = vadd.f32 1e-05, %v690
    %v692 = vpop.f32.mrb[0].mxu0
    %693 = vdwg.mxu0
    %v694 = vrsqrt.pop %v691
    %v695 = vmul.f32 %v619, %v694
    %v696 = vld [vmem:[#allocation11] sm:$0x1]
    %v698 = vlaneseq
    %v699 = vshrl.u32 %v698, 7
    %v700 = vsub.s32 0, %v699
    %v701 = vrot.slane %v696, %v700
    %v703 = vmul.f32 %v695, %v701
    %v704 = vld [vmem:[#allocation13] sm:$0x1]
    %v706 = vlaneseq
    %v707 = vshrl.u32 %v706, 7
    %v708 = vsub.s32 0, %v707
    %v709 = vrot.slane %v704, %v708
    %v711 = vadd.f32 %v703, %v709
    %s712 = scalar_lea.vmem [#allocation2], 4
    %v713 = vld [vmem:[%s712] sm:$0xf]
    %s714 = scalar_lea.vmem [#allocation5], 64
    %v715 = vld [vmem:[%s714] sm:$0xf]
    %v716 = vld [vmem:[%s714 + $0x4] sm:$0xf]
    %v717 = vld [vmem:[%s714 + $0x8] sm:$0xf]
    %v718 = vld [vmem:[%s714 + $0xc] sm:$0xf]
    %v719 = vld [vmem:[%s714 + $0x10] sm:$0xf]
    %v720 = vld [vmem:[%s714 + $0x14] sm:$0xf]
    %v721 = vld [vmem:[%s714 + $0x18] sm:$0xf]
    %v722 = vld [vmem:[%s714 + $0x1c] sm:$0xf]
    %v723 = vld [vmem:[%s714 + $0x20] sm:$0xf]
    %v724 = vld [vmem:[%s714 + $0x24] sm:$0xf]
    %v725 = vld [vmem:[%s714 + $0x28] sm:$0xf]
    %v726 = vld [vmem:[%s714 + $0x2c] sm:$0xf]
    %v727 = vld [vmem:[%s714 + $0x30] sm:$0xf]
    %v728 = vld [vmem:[%s714 + $0x34] sm:$0xf]
    %v729 = vld [vmem:[%s714 + $0x38] sm:$0xf]
    %v730 = vld [vmem:[%s714 + $0x3c] sm:$0xf]
    %s731 = scalar_lea.vmem [#allocation7], 1
    %v732 = vld [vmem:[%s731] sm:$0x1]
    %v734 = vlaneseq
    %v735 = vshrl.u32 %v734, 7
    %v736 = vsub.s32 0, %v735
    %v737 = vrot.slane %v732, %v736
    %v755 = vunpack.c.l.b16 %v715
    %v756 = vunpack.c.l.b16 %v716
    %v757 = vunpack.c.l.b16 %v717
    %v758 = vunpack.c.l.b16 %v718
    %v759 = vunpack.c.l.b16 %v719
    %v760 = vunpack.c.l.b16 %v720
    %v761 = vunpack.c.l.b16 %v721
    %v762 = vunpack.c.l.b16 %v722
    %v763 = vunpack.c.l.b16 %v723
    %v764 = vunpack.c.l.b16 %v724
    %v765 = vunpack.c.l.b16 %v725
    %v766 = vunpack.c.l.b16 %v726
    %v767 = vunpack.c.l.b16 %v727
    %v768 = vunpack.c.l.b16 %v728
    %v769 = vunpack.c.l.b16 %v729
    %v770 = vunpack.c.l.b16 %v730
    %v771 = vpack.c.b16 %v756, %v755
    %v772 = vpack.c.b16 %v758, %v757
    %v773 = vpack.c.b16 %v760, %v759
    %v774 = vpack.c.b16 %v762, %v761
    %v775 = vpack.c.b16 %v764, %v763
    %v776 = vpack.c.b16 %v766, %v765
    %v777 = vpack.c.b16 %v768, %v767
    %v778 = vpack.c.b16 %v770, %v769
    %787 = vmatprep.subr.bf16.mxu0 0
    %788 = vmatpush1.bf16.msra.mxu0 %v771
    %789 = vmatprep.subr.bf16.mxu0 0
    %790 = vmatpush1.bf16.msra.mxu0 %v772
    %791 = vmatprep.subr.bf16.mxu0 0
    %792 = vmatpush1.bf16.msra.mxu0 %v773
    %793 = vmatprep.subr.bf16.mxu0 0
    %794 = vmatpush1.bf16.msra.mxu0 %v774
    %795 = vmatprep.subr.bf16.mxu0 0
    %796 = vmatpush1.bf16.msra.mxu0 %v775
    %797 = vmatprep.subr.bf16.mxu0 0
    %798 = vmatpush1.bf16.msra.mxu0 %v776
    %799 = vmatprep.subr.bf16.mxu0 0
    %800 = vmatpush1.bf16.msra.mxu0 %v777
    %801 = vmatprep.subr.bf16.mxu0 0
    %802 = vmatpush1.bf16.msra.mxu0 %v778
    %803 = vmatprep.subr.bf16.mxu0 0
    %804 = vmatpush1.bf16.msra.mxu0 0
    %805 = vmatprep.subr.bf16.mxu0 0
    %806 = vmatpush1.bf16.msra.mxu0 0
    %807 = vmatprep.subr.bf16.mxu0 0
    %808 = vmatpush1.bf16.msra.mxu0 0
    %809 = vmatprep.subr.bf16.mxu0 0
    %810 = vmatpush1.bf16.msra.mxu0 0
    %811 = vmatprep.subr.bf16.mxu0 0
    %812 = vmatpush1.bf16.msra.mxu0 0
    %813 = vmatprep.subr.bf16.mxu0 0
    %814 = vmatpush1.bf16.msra.mxu0 0
    %815 = vmatprep.subr.bf16.mxu0 0
    %816 = vmatpush1.bf16.msra.mxu0 0
    %817 = vmatprep.subr.bf16.mxu0 0
    %818 = vmatpush1.bf16.msra.mxu0 0
    %819 = vmatprep.mubr.bf16.mxu0 0
    %820 = vmatmul.mubr.bf16.gmra.mrb[0].mxu0 %v713
    %v821 = vpop.f32.mrb[0].mxu0
    %v822 = vadd.f32 %v737, %v821
    %v823 = vpop.f32.mrb[0].mxu0
    %v824 = vpop.f32.mrb[0].mxu0
    %v825 = vpop.f32.mrb[0].mxu0
    %826 = vdwg.mxu0
    %v827 = vmax.f32 %v822, 0.0
    %v828 = vpack.c.bf16 %v827, %v827
    %s829 = scalar_lea.vmem [#allocation8], 64
    %v830 = vld [vmem:[%s829] sm:$0xf]
    %v831 = vld [vmem:[%s829 + $0x4] sm:$0xf]
    %v832 = vld [vmem:[%s829 + $0x8] sm:$0xf]
    %v833 = vld [vmem:[%s829 + $0xc] sm:$0xf]
    %v834 = vld [vmem:[%s829 + $0x10] sm:$0xf]
    %v835 = vld [vmem:[%s829 + $0x14] sm:$0xf]
    %v836 = vld [vmem:[%s829 + $0x18] sm:$0xf]
    %v837 = vld [vmem:[%s829 + $0x1c] sm:$0xf]
    %v838 = vld [vmem:[%s829 + $0x20] sm:$0xf]
    %v839 = vld [vmem:[%s829 + $0x24] sm:$0xf]
    %v840 = vld [vmem:[%s829 + $0x28] sm:$0xf]
    %v841 = vld [vmem:[%s829 + $0x2c] sm:$0xf]
    %v842 = vld [vmem:[%s829 + $0x30] sm:$0xf]
    %v843 = vld [vmem:[%s829 + $0x34] sm:$0xf]
    %v844 = vld [vmem:[%s829 + $0x38] sm:$0xf]
    %v845 = vld [vmem:[%s829 + $0x3c] sm:$0xf]
    %s846 = scalar_lea.vmem [#allocation10], 1
    %v847 = vld [vmem:[%s846] sm:$0x1]
    %v849 = vlaneseq
    %v850 = vshrl.u32 %v849, 7
    %v851 = vsub.s32 0, %v850
    %v852 = vrot.slane %v847, %v851
    %v870 = vunpack.c.l.b16 %v830
    %v871 = vunpack.c.l.b16 %v831
    %v872 = vunpack.c.l.b16 %v832
    %v873 = vunpack.c.l.b16 %v833
    %v874 = vunpack.c.l.b16 %v834
    %v875 = vunpack.c.l.b16 %v835
    %v876 = vunpack.c.l.b16 %v836
    %v877 = vunpack.c.l.b16 %v837
    %v878 = vunpack.c.l.b16 %v838
    %v879 = vunpack.c.l.b16 %v839
    %v880 = vunpack.c.l.b16 %v840
    %v881 = vunpack.c.l.b16 %v841
    %v882 = vunpack.c.l.b16 %v842
    %v883 = vunpack.c.l.b16 %v843
    %v884 = vunpack.c.l.b16 %v844
    %v885 = vunpack.c.l.b16 %v845
    %v886 = vpack.c.b16 %v871, %v870
    %v887 = vpack.c.b16 %v873, %v872
    %v888 = vpack.c.b16 %v875, %v874
    %v889 = vpack.c.b16 %v877, %v876
    %v890 = vpack.c.b16 %v879, %v878
    %v891 = vpack.c.b16 %v881, %v880
    %v892 = vpack.c.b16 %v883, %v882
    %v893 = vpack.c.b16 %v885, %v884
    %902 = vmatprep.subr.bf16.mxu0 0
    %903 = vmatpush1.bf16.msra.mxu0 %v886
    %904 = vmatprep.subr.bf16.mxu0 0
    %905 = vmatpush1.bf16.msra.mxu0 %v887
    %906 = vmatprep.subr.bf16.mxu0 0
    %907 = vmatpush1.bf16.msra.mxu0 %v888
    %908 = vmatprep.subr.bf16.mxu0 0
    %909 = vmatpush1.bf16.msra.mxu0 %v889
    %910 = vmatprep.subr.bf16.mxu0 0
    %911 = vmatpush1.bf16.msra.mxu0 %v890
    %912 = vmatprep.subr.bf16.mxu0 0
    %913 = vmatpush1.bf16.msra.mxu0 %v891
    %914 = vmatprep.subr.bf16.mxu0 0
    %915 = vmatpush1.bf16.msra.mxu0 %v892
    %916 = vmatprep.subr.bf16.mxu0 0
    %917 = vmatpush1.bf16.msra.mxu0 %v893
    %918 = vmatprep.subr.bf16.mxu0 0
    %919 = vmatpush1.bf16.msra.mxu0 0
    %920 = vmatprep.subr.bf16.mxu0 0
    %921 = vmatpush1.bf16.msra.mxu0 0
    %922 = vmatprep.subr.bf16.mxu0 0
    %923 = vmatpush1.bf16.msra.mxu0 0
    %924 = vmatprep.subr.bf16.mxu0 0
    %925 = vmatpush1.bf16.msra.mxu0 0
    %926 = vmatprep.subr.bf16.mxu0 0
    %927 = vmatpush1.bf16.msra.mxu0 0
    %928 = vmatprep.subr.bf16.mxu0 0
    %929 = vmatpush1.bf16.msra.mxu0 0
    %930 = vmatprep.subr.bf16.mxu0 0
    %931 = vmatpush1.bf16.msra.mxu0 0
    %932 = vmatprep.subr.bf16.mxu0 0
    %933 = vmatpush1.bf16.msra.mxu0 0
    %934 = vmatprep.mubr.bf16.mxu0 0
    %935 = vmatmul.mubr.bf16.gmra.mrb[0].mxu0 %v828
    %v936 = vpop.f32.mrb[0].mxu0
    %v937 = vadd.f32 %v852, %v936
    %v938 = vpop.f32.mrb[0].mxu0
    %v939 = vpop.f32.mrb[0].mxu0
    %v940 = vpop.f32.mrb[0].mxu0
    %941 = vdwg.mxu0
    %v943 = vsel %vm545, %v937, 0
    %945 = vmatprep.subr.mxu0 0.0
    %946 = vmatpush1.msra.mxu0 %v312
    %947 = vmatprep.subr.mxu0 0.0
    %948 = vmatpush1.msra.mxu0 %v313
    %949 = vmatprep.subr.mxu0 0.0
    %950 = vmatpush1.msra.mxu0 %v314
    %951 = vmatprep.subr.mxu0 0.0
    %952 = vmatpush1.msra.mxu0 %v315
    %953 = vmatprep.subr.mxu0 0.0
    %954 = vmatpush1.msra.mxu0 %v316
    %955 = vmatprep.subr.mxu0 0.0
    %956 = vmatpush1.msra.mxu0 %v317
    %957 = vmatprep.subr.mxu0 0.0
    %958 = vmatpush1.msra.mxu0 %v318
    %959 = vmatprep.subr.mxu0 0.0
    %960 = vmatpush1.msra.mxu0 %v319
    %961 = vmatprep.subr.mxu0 0.0
    %962 = vmatpush1.msra.mxu0 0.0
    %963 = vmatprep.subr.mxu0 0.0
    %964 = vmatpush1.msra.mxu0 0.0
    %965 = vmatprep.subr.mxu0 0.0
    %966 = vmatpush1.msra.mxu0 0.0
    %967 = vmatprep.subr.mxu0 0.0
    %968 = vmatpush1.msra.mxu0 0.0
    %969 = vmatprep.subr.mxu0 0.0
    %970 = vmatpush1.msra.mxu0 0.0
    %971 = vmatprep.subr.mxu0 0.0
    %972 = vmatpush1.msra.mxu0 0.0
    %973 = vmatprep.subr.mxu0 0.0
    %974 = vmatpush1.msra.mxu0 0.0
    %975 = vmatprep.subr.mxu0 0.0
    %976 = vmatpush1.msra.mxu0 0.0
    %977 = vmatprep.subr.mxu0 0.0
    %978 = vmatpush1.msra.mxu0 0.0
    %979 = vmatprep.subr.mxu0 0.0
    %980 = vmatpush1.msra.mxu0 0.0
    %981 = vmatprep.subr.mxu0 0.0
    %982 = vmatpush1.msra.mxu0 0.0
    %983 = vmatprep.subr.mxu0 0.0
    %984 = vmatpush1.msra.mxu0 0.0
    %985 = vmatprep.subr.mxu0 0.0
    %986 = vmatpush1.msra.mxu0 0.0
    %987 = vmatprep.subr.mxu0 0.0
    %988 = vmatpush1.msra.mxu0 0.0
    %989 = vmatprep.subr.mxu0 0.0
    %990 = vmatpush1.msra.mxu0 0.0
    %991 = vmatprep.subr.mxu0 0.0
    %992 = vmatpush1.msra.mxu0 0.0
    %993 = vmatprep.subr.mxu0 0.0
    %994 = vmatpush1.msra.mxu0 0.0
    %995 = vmatprep.subr.mxu0 0.0
    %996 = vmatpush1.msra.mxu0 0.0
    %997 = vmatprep.subr.mxu0 0.0
    %998 = vmatpush1.msra.mxu0 0.0
    %999 = vmatprep.subr.mxu0 0.0
    %1000 = vmatpush1.msra.mxu0 0.0
    %1001 = vmatprep.subr.mxu0 0.0
    %1002 = vmatpush1.msra.mxu0 0.0
    %1003 = vmatprep.subr.mxu0 0.0
    %1004 = vmatpush1.msra.mxu0 0.0
    %1005 = vmatprep.subr.mxu0 0.0
    %1006 = vmatpush1.msra.mxu0 0.0
    %1007 = vmatprep.subr.mxu0 0.0
    %1008 = vmatpush1.msra.mxu0 0.0
    %1009 = vmatprep.mubr.f32.mxu0 0.0
    %1010 = vmatmul.mubr.f32.gmra.mrb[0].mxu0 %v943
    %v1011 = vpop.f32.mrb[0].mxu0
    %v1012 = vadd.f32 0.0, %v1011
    %v1013 = vpop.f32.mrb[0].mxu0
    %1014 = vdwg.mxu0
    %v1015 = vsub.f32 %v937, %v1012
    %v1016 = vmul.f32 %v1015, %v1015
    %v1018 = vsel %vm545, %v1016, 0
    %1020 = vmatprep.subr.mxu0 0.0
    %1021 = vmatpush1.msra.mxu0 %v312
    %1022 = vmatprep.subr.mxu0 0.0
    %1023 = vmatpush1.msra.mxu0 %v313
    %1024 = vmatprep.subr.mxu0 0.0
    %1025 = vmatpush1.msra.mxu0 %v314
    %1026 = vmatprep.subr.mxu0 0.0
    %1027 = vmatpush1.msra.mxu0 %v315
    %1028 = vmatprep.subr.mxu0 0.0
    %1029 = vmatpush1.msra.mxu0 %v316
    %1030 = vmatprep.subr.mxu0 0.0
    %1031 = vmatpush1.msra.mxu0 %v317
    %1032 = vmatprep.subr.mxu0 0.0
    %1033 = vmatpush1.msra.mxu0 %v318
    %1034 = vmatprep.subr.mxu0 0.0
    %1035 = vmatpush1.msra.mxu0 %v319
    %1036 = vmatprep.subr.mxu0 0.0
    %1037 = vmatpush1.msra.mxu0 0.0
    %1038 = vmatprep.subr.mxu0 0.0
    %1039 = vmatpush1.msra.mxu0 0.0
    %1040 = vmatprep.subr.mxu0 0.0
    %1041 = vmatpush1.msra.mxu0 0.0
    %1042 = vmatprep.subr.mxu0 0.0
    %1043 = vmatpush1.msra.mxu0 0.0
    %1044 = vmatprep.subr.mxu0 0.0
    %1045 = vmatpush1.msra.mxu0 0.0
    %1046 = vmatprep.subr.mxu0 0.0
    %1047 = vmatpush1.msra.mxu0 0.0
    %1048 = vmatprep.subr.mxu0 0.0
    %1049 = vmatpush1.msra.mxu0 0.0
    %1050 = vmatprep.subr.mxu0 0.0
    %1051 = vmatpush1.msra.mxu0 0.0
    %1052 = vmatprep.subr.mxu0 0.0
    %1053 = vmatpush1.msra.mxu0 0.0
    %1054 = vmatprep.subr.mxu0 0.0
    %1055 = vmatpush1.msra.mxu0 0.0
    %1056 = vmatprep.subr.mxu0 0.0
    %1057 = vmatpush1.msra.mxu0 0.0
    %1058 = vmatprep.subr.mxu0 0.0
    %1059 = vmatpush1.msra.mxu0 0.0
    %1060 = vmatprep.subr.mxu0 0.0
    %1061 = vmatpush1.msra.mxu0 0.0
    %1062 = vmatprep.subr.mxu0 0.0
    %1063 = vmatpush1.msra.mxu0 0.0
    %1064 = vmatprep.subr.mxu0 0.0
    %1065 = vmatpush1.msra.mxu0 0.0
    %1066 = vmatprep.subr.mxu0 0.0
    %1067 = vmatpush1.msra.mxu0 0.0
    %1068 = vmatprep.subr.mxu0 0.0
    %1069 = vmatpush1.msra.mxu0 0.0
    %1070 = vmatprep.subr.mxu0 0.0
    %1071 = vmatpush1.msra.mxu0 0.0
    %1072 = vmatprep.subr.mxu0 0.0
    %1073 = vmatpush1.msra.mxu0 0.0
    %1074 = vmatprep.subr.mxu0 0.0
    %1075 = vmatpush1.msra.mxu0 0.0
    %1076 = vmatprep.subr.mxu0 0.0
    %1077 = vmatpush1.msra.mxu0 0.0
    %1078 = vmatprep.subr.mxu0 0.0
    %1079 = vmatpush1.msra.mxu0 0.0
    %1080 = vmatprep.subr.mxu0 0.0
    %1081 = vmatpush1.msra.mxu0 0.0
    %1082 = vmatprep.subr.mxu0 0.0
    %1083 = vmatpush1.msra.mxu0 0.0
    %1084 = vmatprep.mubr.f32.mxu0 0.0
    %1085 = vmatmul.mubr.f32.gmra.mrb[0].mxu0 %v1018
    %v1086 = vpop.f32.mrb[0].mxu0
    %v1087 = vadd.f32 1e-05, %v1086
    %v1088 = vpop.f32.mrb[0].mxu0
    %1089 = vdwg.mxu0
    %v1090 = vrsqrt.pop %v1087
    %v1091 = vmul.f32 %v1015, %v1090
    %s1092 = scalar_lea.vmem [#allocation11], 1
    %v1093 = vld [vmem:[%s1092] sm:$0x1]
    %v1095 = vlaneseq
    %v1096 = vshrl.u32 %v1095, 7
    %v1097 = vsub.s32 0, %v1096
    %v1098 = vrot.slane %v1093, %v1097
    %v1100 = vmul.f32 %v1091, %v1098
    %s1101 = scalar_lea.vmem [#allocation13], 1
    %v1102 = vld [vmem:[%s1101] sm:$0x1]
    %v1104 = vlaneseq
    %v1105 = vshrl.u32 %v1104, 7
    %v1106 = vsub.s32 0, %v1105
    %v1107 = vrot.slane %v1102, %v1106
    %v1109 = vadd.f32 %v1100, %v1107
    %1110 = vst.msk [vmem:[#allocation32] sm:$0xff] %vm545, %v711
    %s1111 = scalar_lea.vmem [#allocation32], 8
    %1112 = vst.msk [vmem:[%s1111] sm:$0xff] %vm545, %v1109
    %v1113 = vpack.c.bf16 %v711, %v711
    %v1114 = vld [vmem:[#allocation16] sm:$0xf]
    %v1115 = vld [vmem:[#allocation16 + $0x4] sm:$0xf]
    %v1116 = vld [vmem:[#allocation16 + $0x8] sm:$0xf]
    %v1117 = vld [vmem:[#allocation16 + $0xc] sm:$0xf]
    %v1118 = vld [vmem:[#allocation16 + $0x10] sm:$0xf]
    %v1119 = vld [vmem:[#allocation16 + $0x14] sm:$0xf]
    %v1120 = vld [vmem:[#allocation16 + $0x18] sm:$0xf]
    %v1121 = vld [vmem:[#allocation16 + $0x1c] sm:$0xf]
    %v1122 = vld [vmem:[#allocation17] sm:$0x1]
    %v1124 = vlaneseq
    %v1125 = vshrl.u32 %v1124, 7
    %v1126 = vsub.s32 0, %v1125
    %v1127 = vrot.slane %v1122, %v1126
    %v1137 = vunpack.c.l.b16 %v1114
    %v1138 = vunpack.c.l.b16 %v1115
    %v1139 = vunpack.c.l.b16 %v1116
    %v1140 = vunpack.c.l.b16 %v1117
    %v1141 = vunpack.c.l.b16 %v1118
    %v1142 = vunpack.c.l.b16 %v1119
    %v1143 = vunpack.c.l.b16 %v1120
    %v1144 = vunpack.c.l.b16 %v1121
    %v1145 = vpack.c.b16 %v1138, %v1137
    %v1146 = vpack.c.b16 %v1140, %v1139
    %v1147 = vpack.c.b16 %v1142, %v1141
    %v1148 = vpack.c.b16 %v1144, %v1143
    %v1154 = vsel %vm545, %v1113, 0
    %1156 = vmatprep.subr.bf16.mxu0 0
    %1157 = vmatpush1.bf16.msra.mxu0 %v1145
    %1158 = vmatprep.subr.bf16.mxu0 0
    %1159 = vmatpush1.bf16.msra.mxu0 %v1146
    %1160 = vmatprep.subr.bf16.mxu0 0
    %1161 = vmatpush1.bf16.msra.mxu0 %v1147
    %1162 = vmatprep.subr.bf16.mxu0 0
    %1163 = vmatpush1.bf16.msra.mxu0 %v1148
    %1164 = vmatprep.subr.bf16.mxu0 0
    %1165 = vmatpush1.bf16.msra.mxu0 0
    %1166 = vmatprep.subr.bf16.mxu0 0
    %1167 = vmatpush1.bf16.msra.mxu0 0
    %1168 = vmatprep.subr.bf16.mxu0 0
    %1169 = vmatpush1.bf16.msra.mxu0 0
    %1170 = vmatprep.subr.bf16.mxu0 0
    %1171 = vmatpush1.bf16.msra.mxu0 0
    %1172 = vmatprep.subr.bf16.mxu0 0
    %1173 = vmatpush1.bf16.msra.mxu0 0
    %1174 = vmatprep.subr.bf16.mxu0 0
    %1175 = vmatpush1.bf16.msra.mxu0 0
    %1176 = vmatprep.subr.bf16.mxu0 0
    %1177 = vmatpush1.bf16.msra.mxu0 0
    %1178 = vmatprep.subr.bf16.mxu0 0
    %1179 = vmatpush1.bf16.msra.mxu0 0
    %1180 = vmatprep.subr.bf16.mxu0 0
    %1181 = vmatpush1.bf16.msra.mxu0 0
    %1182 = vmatprep.subr.bf16.mxu0 0
    %1183 = vmatpush1.bf16.msra.mxu0 0
    %1184 = vmatprep.subr.bf16.mxu0 0
    %1185 = vmatpush1.bf16.msra.mxu0 0
    %1186 = vmatprep.subr.bf16.mxu0 0
    %1187 = vmatpush1.bf16.msra.mxu0 0
    %1188 = vmatprep.mubr.bf16.mxu0 0
    %1189 = vmatmul.mubr.bf16.gmra.mrb[0].mxu0 %v1154
    %v1190 = vpop.f32.mrb[0].mxu0
    %v1191 = vadd.f32 %v1127, %v1190
    %v1192 = vpop.f32.mrb[0].mxu0
    %v1193 = vpop.f32.mrb[0].mxu0
    %v1194 = vpop.f32.mrb[0].mxu0
    %1195 = vdwg.mxu0
    %v1196 = vmax.f32 %v1191, 0.0
    %v1197 = vpack.c.bf16 %v1196, %v1196
    %v1198 = vld [vmem:[#allocation19] sm:$0xf]
    %v1199 = vld [vmem:[#allocation19 + $0x4] sm:$0xf]
    %v1200 = vld [vmem:[#allocation19 + $0x8] sm:$0xf]
    %v1201 = vld [vmem:[#allocation19 + $0xc] sm:$0xf]
    %v1202 = vld [vmem:[#allocation19 + $0x10] sm:$0xf]
    %v1203 = vld [vmem:[#allocation19 + $0x14] sm:$0xf]
    %v1204 = vld [vmem:[#allocation19 + $0x18] sm:$0xf]
    %v1205 = vld [vmem:[#allocation19 + $0x1c] sm:$0xf]
    %v1206 = vld [vmem:[#allocation19 + $0x20] sm:$0xf]
    %v1207 = vld [vmem:[#allocation19 + $0x24] sm:$0xf]
    %v1208 = vld [vmem:[#allocation20] sm:$0x1]
    %v1210 = vlaneseq
    %v1211 = vshrl.u32 %v1210, 7
    %v1212 = vsub.s32 0, %v1211
    %v1213 = vrot.slane %v1208, %v1212
    %v1225 = vunpack.c.l.b16 %v1198
    %v1226 = vunpack.c.l.b16 %v1199
    %v1227 = vunpack.c.l.b16 %v1200
    %v1228 = vunpack.c.l.b16 %v1201
    %v1229 = vunpack.c.l.b16 %v1202
    %v1230 = vunpack.c.l.b16 %v1203
    %v1231 = vunpack.c.l.b16 %v1204
    %v1232 = vunpack.c.l.b16 %v1205
    %v1233 = vunpack.c.l.b16 %v1206
    %v1234 = vunpack.c.l.b16 %v1207
    %v1235 = vpack.c.b16 %v1226, %v1225
    %v1236 = vpack.c.b16 %v1228, %v1227
    %v1237 = vpack.c.b16 %v1230, %v1229
    %v1238 = vpack.c.b16 %v1232, %v1231
    %v1239 = vpack.c.b16 %v1234, %v1233
    %vm1245 = vcmask 654336
    %v1247 = vsel %vm1245, %v1197, 0
    %1249 = vmatprep.subr.bf16.mxu0 0
    %1250 = vmatpush1.bf16.msra.mxu0 %v1235
    %1251 = vmatprep.subr.bf16.mxu0 0
    %1252 = vmatpush1.bf16.msra.mxu0 %v1236
    %1253 = vmatprep.subr.bf16.mxu0 0
    %1254 = vmatpush1.bf16.msra.mxu0 %v1237
    %1255 = vmatprep.subr.bf16.mxu0 0
    %1256 = vmatpush1.bf16.msra.mxu0 %v1238
    %1257 = vmatprep.subr.bf16.mxu0 0
    %1258 = vmatpush1.bf16.msra.mxu0 %v1239
    %1259 = vmatprep.subr.bf16.mxu0 0
    %1260 = vmatpush1.bf16.msra.mxu0 0
    %1261 = vmatprep.subr.bf16.mxu0 0
    %1262 = vmatpush1.bf16.msra.mxu0 0
    %1263 = vmatprep.subr.bf16.mxu0 0
    %1264 = vmatpush1.bf16.msra.mxu0 0
    %1265 = vmatprep.subr.bf16.mxu0 0
    %1266 = vmatpush1.bf16.msra.mxu0 0
    %1267 = vmatprep.subr.bf16.mxu0 0
    %1268 = vmatpush1.bf16.msra.mxu0 0
    %1269 = vmatprep.subr.bf16.mxu0 0
    %1270 = vmatpush1.bf16.msra.mxu0 0
    %1271 = vmatprep.subr.bf16.mxu0 0
    %1272 = vmatpush1.bf16.msra.mxu0 0
    %1273 = vmatprep.subr.bf16.mxu0 0
    %1274 = vmatpush1.bf16.msra.mxu0 0
    %1275 = vmatprep.subr.bf16.mxu0 0
    %1276 = vmatpush1.bf16.msra.mxu0 0
    %1277 = vmatprep.subr.bf16.mxu0 0
    %1278 = vmatpush1.bf16.msra.mxu0 0
    %1279 = vmatprep.subr.bf16.mxu0 0
    %1280 = vmatpush1.bf16.msra.mxu0 0
    %1281 = vmatprep.mubr.bf16.mxu0 0
    %1282 = vmatmul.mubr.bf16.gmra.mrb[0].mxu0 %v1247
    %v1283 = vpop.f32.mrb[0].mxu0
    %v1284 = vadd.f32 %v1213, %v1283
    %v1285 = vpop.f32.mrb[0].mxu0
    %v1286 = vpop.f32.mrb[0].mxu0
    %v1287 = vpop.f32.mrb[0].mxu0
    %1288 = vdwg.mxu0
    %v1289 = vmax.f32 %v1284, 0.0
    %v1290 = vld [vmem:[#allocation25] sm:$0x1]
    %v1291 = vpack.c.bf16 %v1289, %v1289
    %v1292 = vld [vmem:[#allocation22] sm:$0xf]
    %v1293 = vld [vmem:[#allocation22 + $0x4] sm:$0xf]
    %v1294 = vld [vmem:[#allocation22 + $0x8] sm:$0xf]
    %v1295 = vld [vmem:[#allocation22 + $0xc] sm:$0xf]
    %v1296 = vld [vmem:[#allocation22 + $0x10] sm:$0xf]
    %v1297 = vld [vmem:[#allocation23] sm:$0x1]
    %v1299 = vlaneseq
    %v1300 = vshrl.u32 %v1299, 7
    %v1301 = vsub.s32 0, %v1300
    %v1302 = vrot.slane %v1297, %v1301
    %v1309 = vunpack.c.l.b16 %v1292
    %v1310 = vunpack.c.l.b16 %v1293
    %v1311 = vunpack.c.l.b16 %v1294
    %v1312 = vunpack.c.l.b16 %v1295
    %v1313 = vunpack.c.l.b16 %v1296
    %v1314 = vpack.c.b16 %v1310, %v1309
    %v1315 = vpack.c.b16 %v1312, %v1311
    %v1316 = vpack.c.b16 %v1313, %v1313
    %vm1319 = vcmask 326656
    %v1321 = vsel %vm1319, %v1291, 0
    %vm1323 = vcmask 1043456
    %v1325 = vsel %vm1323, %v1316, 0
    %1327 = vmatprep.subr.bf16.mxu0 0
    %1328 = vmatpush1.bf16.msra.mxu0 %v1314
    %1329 = vmatprep.subr.bf16.mxu0 0
    %1330 = vmatpush1.bf16.msra.mxu0 %v1315
    %1331 = vmatprep.subr.bf16.mxu0 0
    %1332 = vmatpush1.bf16.msra.mxu0 %v1325
    %1333 = vmatprep.subr.bf16.mxu0 0
    %1334 = vmatpush1.bf16.msra.mxu0 0
    %1335 = vmatprep.subr.bf16.mxu0 0
    %1336 = vmatpush1.bf16.msra.mxu0 0
    %1337 = vmatprep.subr.bf16.mxu0 0
    %1338 = vmatpush1.bf16.msra.mxu0 0
    %1339 = vmatprep.subr.bf16.mxu0 0
    %1340 = vmatpush1.bf16.msra.mxu0 0
    %1341 = vmatprep.subr.bf16.mxu0 0
    %1342 = vmatpush1.bf16.msra.mxu0 0
    %1343 = vmatprep.subr.bf16.mxu0 0
    %1344 = vmatpush1.bf16.msra.mxu0 0
    %1345 = vmatprep.subr.bf16.mxu0 0
    %1346 = vmatpush1.bf16.msra.mxu0 0
    %1347 = vmatprep.subr.bf16.mxu0 0
    %1348 = vmatpush1.bf16.msra.mxu0 0
    %1349 = vmatprep.subr.bf16.mxu0 0
    %1350 = vmatpush1.bf16.msra.mxu0 0
    %1351 = vmatprep.subr.bf16.mxu0 0
    %1352 = vmatpush1.bf16.msra.mxu0 0
    %1353 = vmatprep.subr.bf16.mxu0 0
    %1354 = vmatpush1.bf16.msra.mxu0 0
    %1355 = vmatprep.subr.bf16.mxu0 0
    %1356 = vmatpush1.bf16.msra.mxu0 0
    %1357 = vmatprep.subr.bf16.mxu0 0
    %1358 = vmatpush1.bf16.msra.mxu0 0
    %1359 = vmatprep.mubr.bf16.mxu0 0
    %1360 = vmatmul.mubr.bf16.gmra.mrb[0].mxu0 %v1321
    %v1361 = vpop.f32.mrb[0].mxu0
    %v1362 = vadd.f32 %v1302, %v1361
    %v1363 = vpop.f32.mrb[0].mxu0
    %v1364 = vpop.f32.mrb[0].mxu0
    %v1365 = vpop.f32.mrb[0].mxu0
    %1366 = vdwg.mxu0
    %v1367 = vxor.u32 %v1362, 2147483648
    %v1368 = vmul.f32 %v1367, 1.442695
    %v1369 = vpow.pop %v1368
    %v1370 = vadd.f32 %v1369, 1.0
    %v1371 = vrcp.pop %v1370
    %v1372 = vmul.f32 1.0, %v1371
    %v1374 = vlaneseq
    %v1375 = vshrl.u32 %v1374, 7
    %v1376 = vsub.s32 0, %v1375
    %v1377 = vrot.slane %v1290, %v1376
    %v1379 = vmul.f32 %v1377, %v1372
    %v1380 = vpack.c.bf16 %v1379, %v1379
    %v1381 = vld [vmem:[#allocation26] sm:$0xf]
    %v1382 = vld [vmem:[#allocation26 + $0x4] sm:$0xf]
    %v1383 = vld [vmem:[#allocation26 + $0x8] sm:$0xf]
    %v1384 = vld [vmem:[#allocation26 + $0xc] sm:$0xf]
    %v1385 = vld [vmem:[#allocation26 + $0x10] sm:$0xf]
    %v1386 = vld [vmem:[#allocation26 + $0x14] sm:$0xf]
    %v1387 = vld [vmem:[#allocation28] sm:$0x1]
    %v1389 = vlaneseq
    %v1390 = vshrl.u32 %v1389, 7
    %v1391 = vsub.s32 0, %v1390
    %v1392 = vrot.slane %v1387, %v1391
    %v1400 = vunpack.c.l.b16 %v1381
    %v1401 = vunpack.c.l.b16 %v1382
    %v1402 = vunpack.c.l.b16 %v1383
    %v1403 = vunpack.c.l.b16 %v1384
    %v1404 = vunpack.c.l.b16 %v1385
    %v1405 = vunpack.c.l.b16 %v1386
    %v1406 = vpack.c.b16 %v1401, %v1400
    %v1407 = vpack.c.b16 %v1403, %v1402
    %v1408 = vpack.c.b16 %v1405, %v1404
    %vm1412 = vcmask 392192
    %v1414 = vsel %vm1412, %v1380, 0
    %1416 = vmatprep.subr.bf16.mxu0 0
    %1417 = vmatpush1.bf16.msra.mxu0 %v1406
    %1418 = vmatprep.subr.bf16.mxu0 0
    %1419 = vmatpush1.bf16.msra.mxu0 %v1407
    %1420 = vmatprep.subr.bf16.mxu0 0
    %1421 = vmatpush1.bf16.msra.mxu0 %v1408
    %1422 = vmatprep.subr.bf16.mxu0 0
    %1423 = vmatpush1.bf16.msra.mxu0 0
    %1424 = vmatprep.subr.bf16.mxu0 0
    %1425 = vmatpush1.bf16.msra.mxu0 0
    %1426 = vmatprep.subr.bf16.mxu0 0
    %1427 = vmatpush1.bf16.msra.mxu0 0
    %1428 = vmatprep.subr.bf16.mxu0 0
    %1429 = vmatpush1.bf16.msra.mxu0 0
    %1430 = vmatprep.subr.bf16.mxu0 0
    %1431 = vmatpush1.bf16.msra.mxu0 0
    %1432 = vmatprep.subr.bf16.mxu0 0
    %1433 = vmatpush1.bf16.msra.mxu0 0
    %1434 = vmatprep.subr.bf16.mxu0 0
    %1435 = vmatpush1.bf16.msra.mxu0 0
    %1436 = vmatprep.subr.bf16.mxu0 0
    %1437 = vmatpush1.bf16.msra.mxu0 0
    %1438 = vmatprep.subr.bf16.mxu0 0
    %1439 = vmatpush1.bf16.msra.mxu0 0
    %1440 = vmatprep.subr.bf16.mxu0 0
    %1441 = vmatpush1.bf16.msra.mxu0 0
    %1442 = vmatprep.subr.bf16.mxu0 0
    %1443 = vmatpush1.bf16.msra.mxu0 0
    %1444 = vmatprep.subr.bf16.mxu0 0
    %1445 = vmatpush1.bf16.msra.mxu0 0
    %1446 = vmatprep.subr.bf16.mxu0 0
    %1447 = vmatpush1.bf16.msra.mxu0 0
    %1448 = vmatprep.mubr.bf16.mxu0 0
    %1449 = vmatmul.mubr.bf16.gmra.mrb[0].mxu0 %v1414
    %v1450 = vpop.f32.mrb[0].mxu0
    %v1451 = vadd.f32 %v1392, %v1450
    %v1452 = vpop.f32.mrb[0].mxu0
    %v1453 = vpop.f32.mrb[0].mxu0
    %v1454 = vpop.f32.mrb[0].mxu0
    %1455 = vdwg.mxu0
    %v1456 = vmax.f32 %v1451, 0.0
    %v1457 = vpack.c.bf16 %v1456, %v1456
    %v1458 = vld [vmem:[#allocation29] sm:$0xf]
    %v1459 = vld [vmem:[#allocation29 + $0x4] sm:$0xf]
    %v1460 = vld [vmem:[#allocation29 + $0x8] sm:$0xf]
    %v1461 = vld [vmem:[#allocation29 + $0xc] sm:$0xf]
    %v1462 = vld [vmem:[#allocation29 + $0x10] sm:$0xf]
    %v1463 = vld [vmem:[#allocation29 + $0x14] sm:$0xf]
    %v1464 = vld [vmem:[#allocation31] sm:$0x1]
    %v1466 = vlaneseq
    %v1467 = vshrl.u32 %v1466, 7
    %v1468 = vsub.s32 0, %v1467
    %v1469 = vrot.slane %v1464, %v1468
    %v1477 = vunpack.c.l.b16 %v1458
    %v1478 = vunpack.c.l.b16 %v1459
    %v1479 = vunpack.c.l.b16 %v1460
    %v1480 = vunpack.c.l.b16 %v1461
    %v1481 = vunpack.c.l.b16 %v1462
    %v1482 = vunpack.c.l.b16 %v1463
    %v1483 = vpack.c.b16 %v1478, %v1477
    %v1484 = vpack.c.b16 %v1480, %v1479
    %v1485 = vpack.c.b16 %v1482, %v1481
    %v1490 = vsel %vm1412, %v1457, 0
    %1492 = vmatprep.subr.bf16.mxu0 0
    %1493 = vmatpush1.bf16.msra.mxu0 %v1483
    %1494 = vmatprep.subr.bf16.mxu0 0
    %1495 = vmatpush1.bf16.msra.mxu0 %v1484
    %1496 = vmatprep.subr.bf16.mxu0 0
    %1497 = vmatpush1.bf16.msra.mxu0 %v1485
    %1498 = vmatprep.subr.bf16.mxu0 0
    %1499 = vmatpush1.bf16.msra.mxu0 0
    %1500 = vmatprep.subr.bf16.mxu0 0
    %1501 = vmatpush1.bf16.msra.mxu0 0
    %1502 = vmatprep.subr.bf16.mxu0 0
    %1503 = vmatpush1.bf16.msra.mxu0 0
    %1504 = vmatprep.subr.bf16.mxu0 0
    %1505 = vmatpush1.bf16.msra.mxu0 0
    %1506 = vmatprep.subr.bf16.mxu0 0
    %1507 = vmatpush1.bf16.msra.mxu0 0
    %1508 = vmatprep.subr.bf16.mxu0 0
    %1509 = vmatpush1.bf16.msra.mxu0 0
    %1510 = vmatprep.subr.bf16.mxu0 0
    %1511 = vmatpush1.bf16.msra.mxu0 0
    %1512 = vmatprep.subr.bf16.mxu0 0
    %1513 = vmatpush1.bf16.msra.mxu0 0
    %1514 = vmatprep.subr.bf16.mxu0 0
    %1515 = vmatpush1.bf16.msra.mxu0 0
    %1516 = vmatprep.subr.bf16.mxu0 0
    %1517 = vmatpush1.bf16.msra.mxu0 0
    %1518 = vmatprep.subr.bf16.mxu0 0
    %1519 = vmatpush1.bf16.msra.mxu0 0
    %1520 = vmatprep.subr.bf16.mxu0 0
    %1521 = vmatpush1.bf16.msra.mxu0 0
    %1522 = vmatprep.subr.bf16.mxu0 0
    %1523 = vmatpush1.bf16.msra.mxu0 0
    %1524 = vmatprep.mubr.bf16.mxu0 0
    %1525 = vmatmul.mubr.bf16.gmra.mrb[0].mxu0 %v1490
    %v1526 = vpop.f32.mrb[0].mxu0
    %v1527 = vadd.f32 %v1469, %v1526
    %v1528 = vpop.f32.mrb[0].mxu0
    %v1529 = vpop.f32.mrb[0].mxu0
    %v1530 = vpop.f32.mrb[0].mxu0
    %1531 = vdwg.mxu0
    %v1532 = vxor.u32 %v1527, 2147483648
    %v1533 = vmul.f32 %v1532, 1.442695
    %v1534 = vpow.pop %v1533
    %v1535 = vadd.f32 %v1534, 1.0
    %v1536 = vrcp.pop %v1535
    %v1537 = vmul.f32 1.0, %v1536
    %v1538 = vpack.c.bf16 %v1109, %v1109
    %v1540 = vsel %vm545, %v1538, 0
    %1542 = vmatprep.subr.bf16.mxu0 0
    %1543 = vmatpush1.bf16.msra.mxu0 %v1145
    %1544 = vmatprep.subr.bf16.mxu0 0
    %1545 = vmatpush1.bf16.msra.mxu0 %v1146
    %1546 = vmatprep.subr.bf16.mxu0 0
    %1547 = vmatpush1.bf16.msra.mxu0 %v1147
    %1548 = vmatprep.subr.bf16.mxu0 0
    %1549 = vmatpush1.bf16.msra.mxu0 %v1148
    %1550 = vmatprep.subr.bf16.mxu0 0
    %1551 = vmatpush1.bf16.msra.mxu0 0
    %1552 = vmatprep.subr.bf16.mxu0 0
    %1553 = vmatpush1.bf16.msra.mxu0 0
    %1554 = vmatprep.subr.bf16.mxu0 0
    %1555 = vmatpush1.bf16.msra.mxu0 0
    %1556 = vmatprep.subr.bf16.mxu0 0
    %1557 = vmatpush1.bf16.msra.mxu0 0
    %1558 = vmatprep.subr.bf16.mxu0 0
    %1559 = vmatpush1.bf16.msra.mxu0 0
    %1560 = vmatprep.subr.bf16.mxu0 0
    %1561 = vmatpush1.bf16.msra.mxu0 0
    %1562 = vmatprep.subr.bf16.mxu0 0
    %1563 = vmatpush1.bf16.msra.mxu0 0
    %1564 = vmatprep.subr.bf16.mxu0 0
    %1565 = vmatpush1.bf16.msra.mxu0 0
    %1566 = vmatprep.subr.bf16.mxu0 0
    %1567 = vmatpush1.bf16.msra.mxu0 0
    %1568 = vmatprep.subr.bf16.mxu0 0
    %1569 = vmatpush1.bf16.msra.mxu0 0
    %1570 = vmatprep.subr.bf16.mxu0 0
    %1571 = vmatpush1.bf16.msra.mxu0 0
    %1572 = vmatprep.subr.bf16.mxu0 0
    %1573 = vmatpush1.bf16.msra.mxu0 0
    %1574 = vmatprep.mubr.bf16.mxu0 0
    %1575 = vmatmul.mubr.bf16.gmra.mrb[0].mxu0 %v1540
    %v1576 = vpop.f32.mrb[0].mxu0
    %v1577 = vadd.f32 %v1127, %v1576
    %v1578 = vpop.f32.mrb[0].mxu0
    %v1579 = vpop.f32.mrb[0].mxu0
    %v1580 = vpop.f32.mrb[0].mxu0
    %1581 = vdwg.mxu0
    %v1582 = vmax.f32 %v1577, 0.0
    %v1583 = vpack.c.bf16 %v1582, %v1582
    %v1585 = vsel %vm1245, %v1583, 0
    %1587 = vmatprep.subr.bf16.mxu0 0
    %1588 = vmatpush1.bf16.msra.mxu0 %v1235
    %1589 = vmatprep.subr.bf16.mxu0 0
    %1590 = vmatpush1.bf16.msra.mxu0 %v1236
    %1591 = vmatprep.subr.bf16.mxu0 0
    %1592 = vmatpush1.bf16.msra.mxu0 %v1237
    %1593 = vmatprep.subr.bf16.mxu0 0
    %1594 = vmatpush1.bf16.msra.mxu0 %v1238
    %1595 = vmatprep.subr.bf16.mxu0 0
    %1596 = vmatpush1.bf16.msra.mxu0 %v1239
    %1597 = vmatprep.subr.bf16.mxu0 0
    %1598 = vmatpush1.bf16.msra.mxu0 0
    %1599 = vmatprep.subr.bf16.mxu0 0
    %1600 = vmatpush1.bf16.msra.mxu0 0
    %1601 = vmatprep.subr.bf16.mxu0 0
    %1602 = vmatpush1.bf16.msra.mxu0 0
    %1603 = vmatprep.subr.bf16.mxu0 0
    %1604 = vmatpush1.bf16.msra.mxu0 0
    %1605 = vmatprep.subr.bf16.mxu0 0
    %1606 = vmatpush1.bf16.msra.mxu0 0
    %1607 = vmatprep.subr.bf16.mxu0 0
    %1608 = vmatpush1.bf16.msra.mxu0 0
    %1609 = vmatprep.subr.bf16.mxu0 0
    %1610 = vmatpush1.bf16.msra.mxu0 0
    %1611 = vmatprep.subr.bf16.mxu0 0
    %1612 = vmatpush1.bf16.msra.mxu0 0
    %1613 = vmatprep.subr.bf16.mxu0 0
    %1614 = vmatpush1.bf16.msra.mxu0 0
    %1615 = vmatprep.subr.bf16.mxu0 0
    %1616 = vmatpush1.bf16.msra.mxu0 0
    %1617 = vmatprep.subr.bf16.mxu0 0
    %1618 = vmatpush1.bf16.msra.mxu0 0
    %1619 = vmatprep.mubr.bf16.mxu0 0
    %1620 = vmatmul.mubr.bf16.gmra.mrb[0].mxu0 %v1585
    %v1621 = vpop.f32.mrb[0].mxu0
    %v1622 = vadd.f32 %v1213, %v1621
    %v1623 = vpop.f32.mrb[0].mxu0
    %v1624 = vpop.f32.mrb[0].mxu0
    %v1625 = vpop.f32.mrb[0].mxu0
    %1626 = vdwg.mxu0
    %v1627 = vmax.f32 %v1622, 0.0
    %v1628 = vpack.c.bf16 %v1627, %v1627
    %v1630 = vsel %vm1319, %v1628, 0
    %1632 = vmatprep.subr.bf16.mxu0 0
    %1633 = vmatpush1.bf16.msra.mxu0 %v1314
    %1634 = vmatprep.subr.bf16.mxu0 0
    %1635 = vmatpush1.bf16.msra.mxu0 %v1315
    %1636 = vmatprep.subr.bf16.mxu0 0
    %1637 = vmatpush1.bf16.msra.mxu0 %v1325
    %1638 = vmatprep.subr.bf16.mxu0 0
    %1639 = vmatpush1.bf16.msra.mxu0 0
    %1640 = vmatprep.subr.bf16.mxu0 0
    %1641 = vmatpush1.bf16.msra.mxu0 0
    %1642 = vmatprep.subr.bf16.mxu0 0
    %1643 = vmatpush1.bf16.msra.mxu0 0
    %1644 = vmatprep.subr.bf16.mxu0 0
    %1645 = vmatpush1.bf16.msra.mxu0 0
    %1646 = vmatprep.subr.bf16.mxu0 0
    %1647 = vmatpush1.bf16.msra.mxu0 0
    %1648 = vmatprep.subr.bf16.mxu0 0
    %1649 = vmatpush1.bf16.msra.mxu0 0
    %1650 = vmatprep.subr.bf16.mxu0 0
    %1651 = vmatpush1.bf16.msra.mxu0 0
    %1652 = vmatprep.subr.bf16.mxu0 0
    %1653 = vmatpush1.bf16.msra.mxu0 0
    %1654 = vmatprep.subr.bf16.mxu0 0
    %1655 = vmatpush1.bf16.msra.mxu0 0
    %1656 = vmatprep.subr.bf16.mxu0 0
    %1657 = vmatpush1.bf16.msra.mxu0 0
    %1658 = vmatprep.subr.bf16.mxu0 0
    %1659 = vmatpush1.bf16.msra.mxu0 0
    %1660 = vmatprep.subr.bf16.mxu0 0
    %1661 = vmatpush1.bf16.msra.mxu0 0
    %1662 = vmatprep.subr.bf16.mxu0 0
    %1663 = vmatpush1.bf16.msra.mxu0 0
    %1664 = vmatprep.mubr.bf16.mxu0 0
    %1665 = vmatmul.mubr.bf16.gmra.mrb[0].mxu0 %v1630
    %v1666 = vpop.f32.mrb[0].mxu0
    %v1667 = vadd.f32 %v1302, %v1666
    %v1668 = vpop.f32.mrb[0].mxu0
    %v1669 = vpop.f32.mrb[0].mxu0
    %v1670 = vpop.f32.mrb[0].mxu0
    %1671 = vdwg.mxu0
    %v1672 = vxor.u32 %v1667, 2147483648
    %v1673 = vmul.f32 %v1672, 1.442695
    %v1674 = vpow.pop %v1673
    %v1675 = vadd.f32 %v1674, 1.0
    %v1676 = vrcp.pop %v1675
    %v1677 = vmul.f32 1.0, %v1676
    %v1678 = vmul.f32 %v1377, %v1677
    %v1679 = vpack.c.bf16 %v1678, %v1678
    %v1681 = vsel %vm1412, %v1679, 0
    %1683 = vmatprep.subr.bf16.mxu0 0
    %1684 = vmatpush1.bf16.msra.mxu0 %v1406
    %1685 = vmatprep.subr.bf16.mxu0 0
    %1686 = vmatpush1.bf16.msra.mxu0 %v1407
    %1687 = vmatprep.subr.bf16.mxu0 0
    %1688 = vmatpush1.bf16.msra.mxu0 %v1408
    %1689 = vmatprep.subr.bf16.mxu0 0
    %1690 = vmatpush1.bf16.msra.mxu0 0
    %1691 = vmatprep.subr.bf16.mxu0 0
    %1692 = vmatpush1.bf16.msra.mxu0 0
    %1693 = vmatprep.subr.bf16.mxu0 0
    %1694 = vmatpush1.bf16.msra.mxu0 0
    %1695 = vmatprep.subr.bf16.mxu0 0
    %1696 = vmatpush1.bf16.msra.mxu0 0
    %1697 = vmatprep.subr.bf16.mxu0 0
    %1698 = vmatpush1.bf16.msra.mxu0 0
    %1699 = vmatprep.subr.bf16.mxu0 0
    %1700 = vmatpush1.bf16.msra.mxu0 0
    %1701 = vmatprep.subr.bf16.mxu0 0
    %1702 = vmatpush1.bf16.msra.mxu0 0
    %1703 = vmatprep.subr.bf16.mxu0 0
    %1704 = vmatpush1.bf16.msra.mxu0 0
    %1705 = vmatprep.subr.bf16.mxu0 0
    %1706 = vmatpush1.bf16.msra.mxu0 0
    %1707 = vmatprep.subr.bf16.mxu0 0
    %1708 = vmatpush1.bf16.msra.mxu0 0
    %1709 = vmatprep.subr.bf16.mxu0 0
    %1710 = vmatpush1.bf16.msra.mxu0 0
    %1711 = vmatprep.subr.bf16.mxu0 0
    %1712 = vmatpush1.bf16.msra.mxu0 0
    %1713 = vmatprep.subr.bf16.mxu0 0
    %1714 = vmatpush1.bf16.msra.mxu0 0
    %1715 = vmatprep.mubr.bf16.mxu0 0
    %1716 = vmatmul.mubr.bf16.gmra.mrb[0].mxu0 %v1681
    %v1717 = vpop.f32.mrb[0].mxu0
    %v1718 = vadd.f32 %v1392, %v1717
    %v1719 = vpop.f32.mrb[0].mxu0
    %v1720 = vpop.f32.mrb[0].mxu0
    %v1721 = vpop.f32.mrb[0].mxu0
    %1722 = vdwg.mxu0
    %v1723 = vmax.f32 %v1718, 0.0
    %v1724 = vpack.c.bf16 %v1723, %v1723
    %v1726 = vsel %vm1412, %v1724, 0
    %1728 = vmatprep.subr.bf16.mxu0 0
    %1729 = vmatpush1.bf16.msra.mxu0 %v1483
    %1730 = vmatprep.subr.bf16.mxu0 0
    %1731 = vmatpush1.bf16.msra.mxu0 %v1484
    %1732 = vmatprep.subr.bf16.mxu0 0
    %1733 = vmatpush1.bf16.msra.mxu0 %v1485
    %1734 = vmatprep.subr.bf16.mxu0 0
    %1735 = vmatpush1.bf16.msra.mxu0 0
    %1736 = vmatprep.subr.bf16.mxu0 0
    %1737 = vmatpush1.bf16.msra.mxu0 0
    %1738 = vmatprep.subr.bf16.mxu0 0
    %1739 = vmatpush1.bf16.msra.mxu0 0
    %1740 = vmatprep.subr.bf16.mxu0 0
    %1741 = vmatpush1.bf16.msra.mxu0 0
    %1742 = vmatprep.subr.bf16.mxu0 0
    %1743 = vmatpush1.bf16.msra.mxu0 0
    %1744 = vmatprep.subr.bf16.mxu0 0
    %1745 = vmatpush1.bf16.msra.mxu0 0
    %1746 = vmatprep.subr.bf16.mxu0 0
    %1747 = vmatpush1.bf16.msra.mxu0 0
    %1748 = vmatprep.subr.bf16.mxu0 0
    %1749 = vmatpush1.bf16.msra.mxu0 0
    %1750 = vmatprep.subr.bf16.mxu0 0
    %1751 = vmatpush1.bf16.msra.mxu0 0
    %1752 = vmatprep.subr.bf16.mxu0 0
    %1753 = vmatpush1.bf16.msra.mxu0 0
    %1754 = vmatprep.subr.bf16.mxu0 0
    %1755 = vmatpush1.bf16.msra.mxu0 0
    %1756 = vmatprep.subr.bf16.mxu0 0
    %1757 = vmatpush1.bf16.msra.mxu0 0
    %1758 = vmatprep.subr.bf16.mxu0 0
    %1759 = vmatpush1.bf16.msra.mxu0 0
    %1760 = vmatprep.mubr.bf16.mxu0 0
    %1761 = vmatmul.mubr.bf16.gmra.mrb[0].mxu0 %v1726
    %v1762 = vpop.f32.mrb[0].mxu0
    %v1763 = vadd.f32 %v1469, %v1762
    %v1764 = vpop.f32.mrb[0].mxu0
    %v1765 = vpop.f32.mrb[0].mxu0
    %v1766 = vpop.f32.mrb[0].mxu0
    %1767 = vdwg.mxu0
    %v1768 = vxor.u32 %v1763, 2147483648
    %v1769 = vmul.f32 %v1768, 1.442695
    %v1770 = vpow.pop %v1769
    %v1771 = vadd.f32 %v1770, 1.0
    %v1772 = vrcp.pop %v1771
    %v1773 = vmul.f32 1.0, %v1772
    %v1774 = vmul.f32 %v1537, %v1773
    %v1775 = vrsqrt.pop %v1774
    %v1776 = vmul.f32 %v1774, %v1775
    %vm1777 = vcmp.eq.f32.partialorder %v1774, inf
    %v1778 = vsel %vm1777, %v1774, %v1776
    %vm1779 = vcmp.eq.f32.partialorder %v1774, 0.0
    %v1780 = vand.u32 %v1774, 2147483648
    %v1781 = vsel %vm1779, %v1780, %v1778
    %vm1782 = vcmask 23552
    %v1783 = vsel %vm1782, %v1781, -inf
    %1784 = vmax.xlane.f32.xlu0 %v1783
    %v1785 = vpop.xlane.xlu0 %1784
    %1786 = vst [vmem:[#allocation33] sm:$0xff] %v1785
    // Predicated region
    $region154: #{retrieval_forward.1} parent=1 // pred_check
      _
    $region155: #{retrieval_forward.1} parent=1 // pred_check_branch
      %1788 = sbr.rel (0) target = $region157
    $region156: #{retrieval_forward.1} parent=1 // pred_region
      %s1790 = ssub.s32 256, 256
      %1791 = vsyncadd [#allocation4], %s1790
      %s1792 = sshll.u32 [#allocation32], 4
      %s1793 = int_to_ptr.vmem [resolvable:$true] %s1792
      %1798 = dma.vmem_to_hbm [thread:$0]  %s1793, 256, %s19, [#allocation4], 128, 128, 8
    $region157: #{retrieval_forward.1} parent=1 // pred_fallthru
      _
    // Predicated region
    $region158: #{retrieval_forward.1} parent=1 // pred_check
      _
    $region159: #{retrieval_forward.1} parent=1 // pred_check_branch
      %1800 = sbr.rel (0) target = $region161
    $region160: #{retrieval_forward.1} parent=1 // pred_region
      %s1802 = ssub.s32 128, 128
      %1803 = vsyncadd [#allocation34], %s1802
      %s1805 = sshll.u32 [#allocation33], 4
      %s1806 = int_to_ptr.vmem [resolvable:$true] %s1805
      %1808 = dma.vmem_to_hbm [thread:$0]  %s1806, 128, %s20, [#allocation34]
    $region161: #{retrieval_forward.1} parent=1 // pred_fallthru
      _
    // Predicated region
    $region162: #{retrieval_forward.1} parent=1 // pred_check
      _
    $region163: #{retrieval_forward.1} parent=1 // pred_check_branch
      %1810 = sbr.rel (0) target = $region165
    $region164: #{retrieval_forward.1} parent=1 // pred_region
      %1811 = dma.done [#allocation4], 256
    $region165: #{retrieval_forward.1} parent=1 // pred_fallthru
      _
    // Predicated region
    $region166: #{retrieval_forward.1} parent=1 // pred_check
      _
    $region167: #{retrieval_forward.1} parent=1 // pred_check_branch
      %1813 = sbr.rel (0) target = $region169
    $region168: #{retrieval_forward.1} parent=1 // pred_region
      %1814 = dma.done [#allocation34], 128
    $region169: #{retrieval_forward.1} parent=1 // pred_fallthru
      _
    %1815 = vsyncpa [#allocation3], 1
    %1816 = vsyncpa [#allocation6], 1
    %1817 = vsyncpa [#allocation9], 1
    %1818 = vsyncpa [#allocation12], 1
    %1819 = vsyncpa [#allocation15], 1
    %1820 = vsyncpa [#allocation18], 1
    %1821 = vsyncpa [#allocation21], 1
    %1822 = vsyncpa [#allocation24], 1
    %1823 = vsyncpa [#allocation27], 1
    %1824 = vsyncpa [#allocation30], 1
    %1825 = vsyncpa [#allocation4], 1
    %1826 = vsyncpa [#allocation34], 1

</llo_original>
